<compile_context>
chip_gen: v7x
topology: tpu7x:2x2x1
jax: 0.10.0
libtpu: 0.0.40
codegen_flags: <defaults>
</compile_context>

<pallas_src>
import jax
import jax.numpy as jnp
from jax import lax
from jax.experimental import pallas as pl
from jax.experimental.pallas import tpu as pltpu

PAD = 128  # lane-dense feature padding


# ----------------------------- Pallas kernel -------------------------------

def _dominant_kernel(a_ref, x_ref, w_ref, wf_ref, b_ref, bf_ref,
                     xrec_ref, s_ref):
    a = a_ref[...]  # (NP, NP) bf16, resident in VMEM for all convs

    def conv_acc(h_bf16, w_bf16, b_f32):
        # X @ W on the MXU (bf16 operands, f32 accumulate), then A @ (XW);
        # bias add stays f32 on the VPU.
        xw = jnp.dot(h_bf16, w_bf16, preferred_element_type=jnp.float32)
        return jnp.dot(a, xw.astype(jnp.bfloat16),
                       preferred_element_type=jnp.float32) + b_f32

    # ---- shared encoder: conv(in->hid) + ReLU, conv(hid->hid) -------------
    h = jnp.maximum(conv_acc(x_ref[...], w_ref[0], b_ref[0]),
                    0.0).astype(jnp.bfloat16)
    h = conv_acc(h, w_ref[1], b_ref[1]).astype(jnp.bfloat16)

    # ---- fused decoder heads: [attr_dec1 (hid->hid) | struct_dec (hid->in)]
    # One 256-wide-output conv; ReLU applies only to the attr half.
    fused = conv_acc(h, wf_ref[...], bf_ref[...])               # (NP, 2*PAD) f32
    xa = jnp.maximum(fused[:, :PAD], 0.0).astype(jnp.bfloat16)  # attr half
    hs = fused[:, PAD:].astype(jnp.bfloat16)                    # struct half (h_)

    # ---- attribute decoder layer 2 (hid->in), no activation ---------------
    xrec_ref[...] = conv_acc(xa, w_ref[2], b_ref[2])            # lane-dense store

    # ---- s_ = h_ @ h_.T : contract last dims => MXU trans_b, no XLU xpose --
    s_ref[...] = lax.dot_general(hs, hs, (((1,), (1,)), ((), ())),
                                 preferred_element_type=jnp.float32)


# ------------------------------- JAX glue ----------------------------------

def normalized_adj(edge_index, n):
    """A^ = D^-1/2 (A + I) D^-1/2 (PyG gcn_norm semantics, dense).

    Duplicate edges are scatter-added; self-loops added only where missing."""
    src, dst = edge_index[0], edge_index[1]
    a = jnp.zeros((n, n), jnp.float32).at[src, dst].add(1.0)
    idx = jnp.arange(n)
    diag = a[idx, idx]
    a = a.at[idx, idx].add(jnp.where(diag == 0.0, 1.0, 0.0))
    deg = a.sum(axis=1)
    dinv = jnp.where(deg > 0, 1.0 / jnp.sqrt(deg), 0.0)
    return dinv[:, None] * a * dinv[None, :]


def _glorot(key, fan_in, fan_out):
    limit = jnp.sqrt(6.0 / (fan_in + fan_out))
    return jax.random.uniform(key, (fan_in, fan_out), jnp.float32,
                              minval=-limit, maxval=limit)


def _make_gcn_params(key, in_ch, hid_ch, out_ch, num_layers):
    """List of (W, b) matching PyG's BasicGNN layer sizing."""
    if num_layers == 1:
        dims = [(in_ch, out_ch)]
    else:
        dims = [(in_ch, hid_ch)]
        dims += [(hid_ch, hid_ch)] * (num_layers - 2)
        dims += [(hid_ch, out_ch)]
    layers = []
    for fi, fo in dims:
        key, sub = jax.random.split(key)
        layers.append((_glorot(sub, fi, fo),
                       jnp.zeros((1, fo), jnp.float32)))  # GCNConv bias init 0
    return layers


def init_dominant_params(key, in_dim, hid_dim, num_layers):
    decoder_layers = int(num_layers / 2)
    encoder_layers = num_layers - decoder_layers
    k1, k2, k3 = jax.random.split(key, 3)
    return {
        "encoder": _make_gcn_params(k1, in_dim, hid_dim, hid_dim, encoder_layers),
        "attr_decoder": _make_gcn_params(k2, hid_dim, hid_dim, in_dim, decoder_layers),
        "struct_decoder": _make_gcn_params(k3, hid_dim, hid_dim, in_dim,
                                           decoder_layers - 1),
    }


def _pad_block(mat, rows, cols):
    out = jnp.zeros((rows, cols), jnp.float32)
    return out.at[:mat.shape[0], :mat.shape[1]].set(mat)


def _vmem_limit_bytes(npad, pad):
    """Resident working set (A, X, weights, biases, both outputs) + scratch,
    with generous headroom; clamped well under every chip's physical VMEM."""
    resident = (npad * npad * 2           # A bf16
                + npad * pad * 2          # X bf16
                + 3 * pad * pad * 2       # W stack bf16
                + pad * 2 * pad * 2       # fused W bf16
                + 5 * 2 * pad * 4         # biases f32
                + npad * pad * 4          # x_rec out f32
                + npad * npad * 4)        # s_ out f32
    scratch = 6 * npad * 2 * pad * 4      # live f32/bf16 intermediates
    return int(min(96 << 20, max(8 << 20, 4 * (resident + scratch))))


def dominant_forward(params, x, edge_index, pad=PAD):
    n, in_dim = x.shape
    npad = ((n + pad - 1) // pad) * pad   # lane-dense node dim for A and s_

    a = normalized_adj(edge_index, n)
    a_pad = (jnp.zeros((npad, npad), jnp.float32).at[:n, :n].set(a)
             .astype(jnp.bfloat16))
    x_pad = (jnp.zeros((npad, pad), jnp.float32).at[:n, :in_dim].set(x)
             .astype(jnp.bfloat16))

    enc = params["encoder"]
    attr = params["attr_decoder"]
    struct = params["struct_decoder"]
    assert len(enc) == 2 and len(attr) == 2 and len(struct) == 1, \
        "kernel is specialized for num_layers=4 (2 enc / 2 attr / 1 struct)"
    # TODO(synk): generalize the fused decoder-head layout to other num_layers.

    # Non-fused convs: enc1, enc2, attr-decoder layer 2.
    w_stack = jnp.stack([_pad_block(enc[0][0], pad, pad),
                         _pad_block(enc[1][0], pad, pad),
                         _pad_block(attr[1][0], pad, pad)]).astype(jnp.bfloat16)
    b_stack = jnp.stack([_pad_block(enc[0][1], 1, pad),
                         _pad_block(enc[1][1], 1, pad),
                         _pad_block(attr[1][1], 1, pad)])

    # Fused conv: attr-dec layer 1 (hid->hid, gets ReLU) || struct-dec (hid->in).
    wa, ba = attr[0]
    ws, bs = struct[0]
    w_fused = jnp.zeros((pad, 2 * pad), jnp.float32)
    w_fused = w_fused.at[:wa.shape[0], :wa.shape[1]].set(wa)
    w_fused = w_fused.at[:ws.shape[0], pad:pad + ws.shape[1]].set(ws)
    w_fused = w_fused.astype(jnp.bfloat16)
    b_fused = jnp.zeros((1, 2 * pad), jnp.float32)
    b_fused = b_fused.at[:, :ba.shape[1]].set(ba)
    b_fused = b_fused.at[:, pad:pad + bs.shape[1]].set(bs)

    x_rec_pad, s_pad = pl.pallas_call(
        _dominant_kernel,
        out_shape=(jax.ShapeDtypeStruct((npad, pad), jnp.float32),
                   jax.ShapeDtypeStruct((npad, npad), jnp.float32)),
        in_specs=[pl.BlockSpec(memory_space=pltpu.MemorySpace.VMEM)] * 6,
        out_specs=(pl.BlockSpec(memory_space=pltpu.MemorySpace.VMEM),
                   pl.BlockSpec(memory_space=pltpu.MemorySpace.VMEM)),
        compiler_params=pltpu.CompilerParams(
            vmem_limit_bytes=_vmem_limit_bytes(npad, pad)),
    )(a_pad, x_pad, w_stack, w_fused, b_stack, b_fused)

    # Padded rows/cols carry only bias-derived garbage that never feeds back
    # into real nodes (their A rows/cols are zero); slice them away.
    return x_rec_pad[:n, :in_dim], s_pad[:n, :n]


# --------------------------------- main -------------------------------------

if __name__ == "__main__":
    N, IN_DIM, HID_DIM, NUM_LAYERS = 64, 16, 32, 4

    key = jax.random.PRNGKey(0)
    kx, kp = jax.random.split(key)

    # node features [N, in_dim]
    x = jax.random.normal(kx, (N, IN_DIM), dtype=jnp.float32)

    # undirected ring graph, edge_index [2, 2N]
    src = jnp.arange(N, dtype=jnp.int32)
    dst = (src + 1) % N
    edge_index = jnp.stack([jnp.concatenate([src, dst]),
                            jnp.concatenate([dst, src])])

    params = init_dominant_params(kp, IN_DIM, HID_DIM, NUM_LAYERS)

    x_, s_ = dominant_forward(params, x, edge_index)
    jax.block_until_ready((x_, s_))

    assert x_.shape == (N, IN_DIM)
    assert s_.shape == (N, N)
    assert bool(jnp.all(jnp.isfinite(x_))) and bool(jnp.all(jnp.isfinite(s_)))
    # s_ = h_ h_^T must be (numerically-near) symmetric.
    assert bool(jnp.max(jnp.abs(s_ - s_.T)) < 1e-3)
    print("KERNEL_OK")
</pallas_src>

<mosaic_0001>
module attributes {stable_mosaic.version = 11 : i64} {
  func.func @_dominant_kernel(%arg0: memref<128x128xbf16, #tpu.memory_space<vmem>>, %arg1: memref<128x128xbf16, #tpu.memory_space<vmem>>, %arg2: memref<3x128x128xbf16, #tpu.memory_space<vmem>>, %arg3: memref<128x256xbf16, #tpu.memory_space<vmem>>, %arg4: memref<3x1x128xf32, #tpu.memory_space<vmem>>, %arg5: memref<1x256xf32, #tpu.memory_space<vmem>>, %arg6: memref<128x128xf32, #tpu.memory_space<vmem>>, %arg7: memref<128x128xf32, #tpu.memory_space<vmem>>) attributes {dimension_semantics = [], scalar_prefetch = 0 : i64, scratch_operands = 0 : i64, tpu.core_type = #tpu.core_type<tc>} {
    %c0 = arith.constant 0 : index
    %c0_0 = arith.constant 0 : index
    %0 = vector.load %arg0[%c0, %c0_0] : memref<128x128xbf16, #tpu.memory_space<vmem>>, vector<128x128xbf16>
    %c0_1 = arith.constant 0 : index
    %c0_2 = arith.constant 0 : index
    %1 = vector.load %arg1[%c0_1, %c0_2] : memref<128x128xbf16, #tpu.memory_space<vmem>>, vector<128x128xbf16>
    %c0_3 = arith.constant 0 : index
    %c0_4 = arith.constant 0 : index
    %c0_5 = arith.constant 0 : index
    %2 = vector.load %arg2[%c0_3, %c0_4, %c0_5] : memref<3x128x128xbf16, #tpu.memory_space<vmem>>, vector<1x128x128xbf16>
    %3 = vector.shape_cast %2 : vector<1x128x128xbf16> to vector<128x128xbf16>
    %c0_6 = arith.constant 0 : index
    %c0_7 = arith.constant 0 : index
    %c0_8 = arith.constant 0 : index
    %4 = vector.load %arg4[%c0_6, %c0_7, %c0_8] : memref<3x1x128xf32, #tpu.memory_space<vmem>>, vector<1x1x128xf32>
    %5 = vector.shape_cast %4 : vector<1x1x128xf32> to vector<1x128xf32>
    %cst = arith.constant dense<0.000000e+00> : vector<128x128xf32>
    %6 = tpu.matmul %1, %3, %cst {dimension_numbers = #tpu.dot_dimension_numbers<[1], [0], [0], [1], [0, 0, 1, 1], [], []>} : vector<128x128xbf16>, vector<128x128xbf16>, vector<128x128xf32> -> vector<128x128xf32>
    %7 = arith.truncf %6 : vector<128x128xf32> to vector<128x128xbf16>
    %cst_9 = arith.constant dense<0.000000e+00> : vector<128x128xf32>
    %8 = tpu.matmul %0, %7, %cst_9 {dimension_numbers = #tpu.dot_dimension_numbers<[1], [0], [0], [1], [0, 0, 1, 1], [], []>} : vector<128x128xbf16>, vector<128x128xbf16>, vector<128x128xf32> -> vector<128x128xf32>
    %9 = vector.broadcast %5 : vector<1x128xf32> to vector<128x128xf32>
    %10 = arith.addf %8, %9 : vector<128x128xf32>
    %cst_10 = arith.constant 0.000000e+00 : f32
    %11 = vector.broadcast %cst_10 : f32 to vector<128x128xf32>
    %12 = arith.maximumf %10, %11 : vector<128x128xf32>
    %13 = arith.truncf %12 : vector<128x128xf32> to vector<128x128xbf16>
    %c1 = arith.constant 1 : index
    %c0_11 = arith.constant 0 : index
    %c0_12 = arith.constant 0 : index
    %14 = vector.load %arg2[%c1, %c0_11, %c0_12] : memref<3x128x128xbf16, #tpu.memory_space<vmem>>, vector<1x128x128xbf16>
    %15 = vector.shape_cast %14 : vector<1x128x128xbf16> to vector<128x128xbf16>
    %c1_13 = arith.constant 1 : index
    %c0_14 = arith.constant 0 : index
    %c0_15 = arith.constant 0 : index
    %16 = vector.load %arg4[%c1_13, %c0_14, %c0_15] : memref<3x1x128xf32, #tpu.memory_space<vmem>>, vector<1x1x128xf32>
    %17 = vector.shape_cast %16 : vector<1x1x128xf32> to vector<1x128xf32>
    %cst_16 = arith.constant dense<0.000000e+00> : vector<128x128xf32>
    %18 = tpu.matmul %13, %15, %cst_16 {dimension_numbers = #tpu.dot_dimension_numbers<[1], [0], [0], [1], [0, 0, 1, 1], [], []>} : vector<128x128xbf16>, vector<128x128xbf16>, vector<128x128xf32> -> vector<128x128xf32>
    %19 = arith.truncf %18 : vector<128x128xf32> to vector<128x128xbf16>
    %cst_17 = arith.constant dense<0.000000e+00> : vector<128x128xf32>
    %20 = tpu.matmul %0, %19, %cst_17 {dimension_numbers = #tpu.dot_dimension_numbers<[1], [0], [0], [1], [0, 0, 1, 1], [], []>} : vector<128x128xbf16>, vector<128x128xbf16>, vector<128x128xf32> -> vector<128x128xf32>
    %21 = vector.broadcast %17 : vector<1x128xf32> to vector<128x128xf32>
    %22 = arith.addf %20, %21 : vector<128x128xf32>
    %23 = arith.truncf %22 : vector<128x128xf32> to vector<128x128xbf16>
    %c0_18 = arith.constant 0 : index
    %c0_19 = arith.constant 0 : index
    %24 = vector.load %arg3[%c0_18, %c0_19] : memref<128x256xbf16, #tpu.memory_space<vmem>>, vector<128x256xbf16>
    %c0_20 = arith.constant 0 : index
    %c0_21 = arith.constant 0 : index
    %25 = vector.load %arg5[%c0_20, %c0_21] : memref<1x256xf32, #tpu.memory_space<vmem>>, vector<1x256xf32>
    %cst_22 = arith.constant dense<0.000000e+00> : vector<128x256xf32>
    %26 = tpu.matmul %23, %24, %cst_22 {dimension_numbers = #tpu.dot_dimension_numbers<[1], [0], [0], [1], [0, 0, 1, 1], [], []>} : vector<128x128xbf16>, vector<128x256xbf16>, vector<128x256xf32> -> vector<128x256xf32>
    %27 = arith.truncf %26 : vector<128x256xf32> to vector<128x256xbf16>
    %cst_23 = arith.constant dense<0.000000e+00> : vector<128x256xf32>
    %28 = tpu.matmul %0, %27, %cst_23 {dimension_numbers = #tpu.dot_dimension_numbers<[1], [0], [0], [1], [0, 0, 1, 1], [], []>} : vector<128x128xbf16>, vector<128x256xbf16>, vector<128x256xf32> -> vector<128x256xf32>
    %29 = vector.broadcast %25 : vector<1x256xf32> to vector<128x256xf32>
    %30 = arith.addf %28, %29 : vector<128x256xf32>
    %31 = vector.extract_strided_slice %30 {offsets = [0, 0], sizes = [128, 128], strides = [1, 1]} : vector<128x256xf32> to vector<128x128xf32>
    %cst_24 = arith.constant 0.000000e+00 : f32
    %32 = vector.broadcast %cst_24 : f32 to vector<128x128xf32>
    %33 = arith.maximumf %31, %32 : vector<128x128xf32>
    %34 = arith.truncf %33 : vector<128x128xf32> to vector<128x128xbf16>
    %35 = vector.extract_strided_slice %30 {offsets = [0, 128], sizes = [128, 128], strides = [1, 1]} : vector<128x256xf32> to vector<128x128xf32>
    %36 = arith.truncf %35 : vector<128x128xf32> to vector<128x128xbf16>
    %c2 = arith.constant 2 : index
    %c0_25 = arith.constant 0 : index
    %c0_26 = arith.constant 0 : index
    %37 = vector.load %arg2[%c2, %c0_25, %c0_26] : memref<3x128x128xbf16, #tpu.memory_space<vmem>>, vector<1x128x128xbf16>
    %38 = vector.shape_cast %37 : vector<1x128x128xbf16> to vector<128x128xbf16>
    %c2_27 = arith.constant 2 : index
    %c0_28 = arith.constant 0 : index
    %c0_29 = arith.constant 0 : index
    %39 = vector.load %arg4[%c2_27, %c0_28, %c0_29] : memref<3x1x128xf32, #tpu.memory_space<vmem>>, vector<1x1x128xf32>
    %40 = vector.shape_cast %39 : vector<1x1x128xf32> to vector<1x128xf32>
    %cst_30 = arith.constant dense<0.000000e+00> : vector<128x128xf32>
    %41 = tpu.matmul %34, %38, %cst_30 {dimension_numbers = #tpu.dot_dimension_numbers<[1], [0], [0], [1], [0, 0, 1, 1], [], []>} : vector<128x128xbf16>, vector<128x128xbf16>, vector<128x128xf32> -> vector<128x128xf32>
    %42 = arith.truncf %41 : vector<128x128xf32> to vector<128x128xbf16>
    %cst_31 = arith.constant dense<0.000000e+00> : vector<128x128xf32>
    %43 = tpu.matmul %0, %42, %cst_31 {dimension_numbers = #tpu.dot_dimension_numbers<[1], [0], [0], [1], [0, 0, 1, 1], [], []>} : vector<128x128xbf16>, vector<128x128xbf16>, vector<128x128xf32> -> vector<128x128xf32>
    %44 = vector.broadcast %40 : vector<1x128xf32> to vector<128x128xf32>
    %45 = arith.addf %43, %44 : vector<128x128xf32>
    %c0_32 = arith.constant 0 : index
    %c0_33 = arith.constant 0 : index
    %46 = vector.load %arg6[%c0_32, %c0_33] : memref<128x128xf32, #tpu.memory_space<vmem>>, vector<128x128xf32>
    tpu.vector_store %arg6[%c0_32, %c0_33], %45 {strides = array<i32>} : memref<128x128xf32, #tpu.memory_space<vmem>>, vector<128x128xf32>,
    %cst_34 = arith.constant dense<0.000000e+00> : vector<128x128xf32>
    %47 = tpu.matmul %36, %36, %cst_34 {dimension_numbers = #tpu.dot_dimension_numbers<[1], [1], [0], [0], [0, 0, 1, 0], [], []>} : vector<128x128xbf16>, vector<128x128xbf16>, vector<128x128xf32> -> vector<128x128xf32>
    %c0_35 = arith.constant 0 : index
    %c0_36 = arith.constant 0 : index
    %48 = vector.load %arg7[%c0_35, %c0_36] : memref<128x128xf32, #tpu.memory_space<vmem>>, vector<128x128xf32>
    tpu.vector_store %arg7[%c0_35, %c0_36], %47 {strides = array<i32>} : memref<128x128xf32, #tpu.memory_space<vmem>>, vector<128x128xf32>,
    return
  }
}

</mosaic_0001>

<llo_original>
// kernel: tpu_custom_call.1
$region0: #{tpu_custom_call.1}
  #allocation0 [shape = 'u32[]', space=smem, size = 0x4, offset = 0x4, fixed_abs, tag = 'smem constant byte address 0x4 - core index']
  #allocation1 [shape = 'u32[144,128]{1,0:T(1,128)}', space=vmem, size = 0x12000, scoped, tag = 'internal scratch']
  %s0 = inlined_call_operand.hbm [shape: bf16[128,128], index: 0, kind: input, shape index: {}]
  %s1 = inlined_call_operand.hbm [shape: bf16[128,128], index: 1, kind: input, shape index: {}]
  %s2 = inlined_call_operand.hbm [shape: bf16[3,128,128], index: 2, kind: input, shape index: {}]
  %s3 = inlined_call_operand.hbm [shape: bf16[128,256], index: 3, kind: input, shape index: {}]
  %s4 = inlined_call_operand.vmem [shape: f32[3,1,128], index: 4, kind: input, shape index: {}]
  %s5 = inlined_call_operand.vmem [shape: f32[1,256], index: 5, kind: input, shape index: {}]
  %s6 = inlined_call_operand.hbm [shape: f32[128,128], index: 6, kind: output, shape index: {0}]
  %s7 = inlined_call_operand.hbm [shape: f32[128,128], index: 7, kind: output, shape index: {1}]
  %8 = xla_tuple %s6, %s7
  %s9 = sld [smem:[#allocation0]]
  $region58: #{tpu_custom_call.1} parent=0
    _
  %s11 = ssub.s32 1, %s9
  %s12 = scalar_select 0, %s11, %s9
  $region1: #{tpu_custom_call.1} parent=0
    #allocation2 [shape = 'u8[32768]{0}', space=vmem, size = 0x8000, scoped, tag = 'input window, operand 0, single buffered']
    #allocation3 [shape = 's32[1]{0}', space=sflag, size = 0x4, scoped, tag = 'scoped memory for tpu_custom_call.1']
    #allocation4 [shape = 's32[1]{0}', space=sflag, size = 0x4, scoped, tag = 'scoped memory for tpu_custom_call.1']
    #allocation5 [shape = 'u8[32768]{0}', space=vmem, size = 0x8000, scoped, tag = 'input window, operand 1, single buffered']
    #allocation6 [shape = 's32[1]{0}', space=sflag, size = 0x4, scoped, tag = 'scoped memory for tpu_custom_call.1']
    #allocation7 [shape = 'u8[98304]{0}', space=vmem, size = 0x18000, scoped, tag = 'input window, operand 2, single buffered']
    #allocation8 [shape = 'u8[65536]{0}', space=vmem, size = 0x10000, scoped, tag = 'input window, operand 3, single buffered']
    #allocation9 [shape = 's32[1]{0}', space=sflag, size = 0x4, scoped, tag = 'scoped memory for tpu_custom_call.1']
    #allocation10 [shape = 'u8[65536]{0}', space=vmem, size = 0x10000, scoped, tag = 'output window, operand 0, single buffered']
    #allocation11 [shape = 'u8[65536]{0}', space=vmem, size = 0x10000, scoped, tag = 'output window, operand 1, single buffered']
    #allocation12 [shape = 's32[1]{0}', space=sflag, size = 0x4, scoped, tag = 'scoped memory for tpu_custom_call.1']
    %13 = vsyncpa [#allocation3], 0
    %14 = vsyncpa [#allocation6], 0
    %15 = vsyncpa [#allocation9], 0
    %16 = vsyncpa [#allocation4], 0
    %17 = vsyncpa [#allocation12], 0
    // Predicated region
    $region2: #{tpu_custom_call.1} parent=1 // pred_check
      _
    $region3: #{tpu_custom_call.1} parent=1 // pred_check_branch
      %19 = sbr.rel (0) target = $region5
    $region4: #{tpu_custom_call.1} parent=1 // pred_region
      %s21 = ssub.s32 1024, 1024
      %22 = vsyncadd [#allocation3], %s21
      %s23 = sshll.u32 [#allocation2], 4
      %s24 = int_to_ptr.vmem [resolvable:$true] %s23
      %29 = dma.hbm_to_vmem [thread:$0]  %s0, 1024, %s24, [#allocation3], 64, 64, 4
    $region5: #{tpu_custom_call.1} parent=1 // pred_fallthru
      _
    // Predicated region
    $region6: #{tpu_custom_call.1} parent=1 // pred_check
      _
    $region7: #{tpu_custom_call.1} parent=1 // pred_check_branch
      %31 = sbr.rel (0) target = $region9
    $region8: #{tpu_custom_call.1} parent=1 // pred_region
      %s33 = ssub.s32 1024, 1024
      %34 = vsyncadd [#allocation6], %s33
      %s35 = sshll.u32 [#allocation5], 4
      %s36 = int_to_ptr.vmem [resolvable:$true] %s35
      %41 = dma.hbm_to_vmem [thread:$0]  %s1, 1024, %s36, [#allocation6], 64, 64, 4
    $region9: #{tpu_custom_call.1} parent=1 // pred_fallthru
      _
    // Predicated region
    $region10: #{tpu_custom_call.1} parent=1 // pred_check
      _
    $region11: #{tpu_custom_call.1} parent=1 // pred_check_branch
      %43 = sbr.rel (0) target = $region13
    $region12: #{tpu_custom_call.1} parent=1 // pred_region
      %s45 = ssub.s32 3072, 3072
      %46 = vsyncadd [#allocation6], %s45
      %s47 = sshll.u32 [#allocation7], 4
      %s48 = int_to_ptr.vmem [resolvable:$true] %s47
      %53 = dma.hbm_to_vmem [thread:$0]  %s2, 3072, %s48, [#allocation6], 64, 64, 4
    $region13: #{tpu_custom_call.1} parent=1 // pred_fallthru
      _
    // Predicated region
    $region14: #{tpu_custom_call.1} parent=1 // pred_check
      _
    $region15: #{tpu_custom_call.1} parent=1 // pred_check_branch
      %55 = sbr.rel (0) target = $region17
    $region16: #{tpu_custom_call.1} parent=1 // pred_region
      %s57 = ssub.s32 2048, 2048
      %58 = vsyncadd [#allocation9], %s57
      %s59 = sshll.u32 [#allocation8], 4
      %s60 = int_to_ptr.vmem [resolvable:$true] %s59
      %65 = dma.hbm_to_vmem [thread:$0]  %s3, 2048, %s60, [#allocation9], 128, 128, 8
    $region17: #{tpu_custom_call.1} parent=1 // pred_fallthru
      _
    // Predicated region
    $region18: #{tpu_custom_call.1} parent=1 // pred_check
      _
    $region19: #{tpu_custom_call.1} parent=1 // pred_check_branch
      %67 = sbr.rel (0) target = $region21
    $region20: #{tpu_custom_call.1} parent=1 // pred_region
      _
    $region21: #{tpu_custom_call.1} parent=1 // pred_fallthru
      _
    // Predicated region
    $region22: #{tpu_custom_call.1} parent=1 // pred_check
      _
    $region23: #{tpu_custom_call.1} parent=1 // pred_check_branch
      %69 = sbr.rel (0) target = $region25
    $region24: #{tpu_custom_call.1} parent=1 // pred_region
      _
    $region25: #{tpu_custom_call.1} parent=1 // pred_fallthru
      _
    // Predicated region
    $region26: #{tpu_custom_call.1} parent=1 // pred_check
      _
    $region27: #{tpu_custom_call.1} parent=1 // pred_check_branch
      %71 = sbr.rel (0) target = $region29
    $region28: #{tpu_custom_call.1} parent=1 // pred_region
      %72 = dma.done [#allocation3], 1024
    $region29: #{tpu_custom_call.1} parent=1 // pred_fallthru
      _
    // Predicated region
    $region30: #{tpu_custom_call.1} parent=1 // pred_check
      _
    $region31: #{tpu_custom_call.1} parent=1 // pred_check_branch
      %74 = sbr.rel (0) target = $region33
    $region32: #{tpu_custom_call.1} parent=1 // pred_region
      %75 = dma.done [#allocation6], 1024
    $region33: #{tpu_custom_call.1} parent=1 // pred_fallthru
      _
    // Predicated region
    $region34: #{tpu_custom_call.1} parent=1 // pred_check
      _
    $region35: #{tpu_custom_call.1} parent=1 // pred_check_branch
      %77 = sbr.rel (0) target = $region37
    $region36: #{tpu_custom_call.1} parent=1 // pred_region
      %78 = dma.done [#allocation6], 3072
    $region37: #{tpu_custom_call.1} parent=1 // pred_fallthru
      _
    // Predicated region
    $region38: #{tpu_custom_call.1} parent=1 // pred_check
      _
    $region39: #{tpu_custom_call.1} parent=1 // pred_check_branch
      %80 = sbr.rel (0) target = $region41
    $region40: #{tpu_custom_call.1} parent=1 // pred_region
      %81 = dma.done [#allocation9], 2048
    $region41: #{tpu_custom_call.1} parent=1 // pred_fallthru
      _
    %v83 = vld [vmem:[#allocation2] sm:$0xf]
    %v84 = vld [vmem:[#allocation2 + $0x4] sm:$0xf]
    %v85 = vld [vmem:[#allocation2 + $0x8] sm:$0xf]
    %v86 = vld [vmem:[#allocation2 + $0xc] sm:$0xf]
    %v87 = vld [vmem:[#allocation2 + $0x10] sm:$0xf]
    %v88 = vld [vmem:[#allocation2 + $0x14] sm:$0xf]
    %v89 = vld [vmem:[#allocation2 + $0x18] sm:$0xf]
    %v90 = vld [vmem:[#allocation2 + $0x1c] sm:$0xf]
    %v91 = vld [vmem:[#allocation2 + $0x20] sm:$0xf]
    %v92 = vld [vmem:[#allocation2 + $0x24] sm:$0xf]
    %v93 = vld [vmem:[#allocation2 + $0x28] sm:$0xf]
    %v94 = vld [vmem:[#allocation2 + $0x2c] sm:$0xf]
    %v95 = vld [vmem:[#allocation2 + $0x30] sm:$0xf]
    %v96 = vld [vmem:[#allocation2 + $0x34] sm:$0xf]
    %v97 = vld [vmem:[#allocation2 + $0x38] sm:$0xf]
    %v98 = vld [vmem:[#allocation2 + $0x3c] sm:$0xf]
    %v99 = vld [vmem:[#allocation5] sm:$0xf]
    %v100 = vld [vmem:[#allocation5 + $0x4] sm:$0xf]
    %v101 = vld [vmem:[#allocation5 + $0x8] sm:$0xf]
    %v102 = vld [vmem:[#allocation5 + $0xc] sm:$0xf]
    %v103 = vld [vmem:[#allocation5 + $0x10] sm:$0xf]
    %v104 = vld [vmem:[#allocation5 + $0x14] sm:$0xf]
    %v105 = vld [vmem:[#allocation5 + $0x18] sm:$0xf]
    %v106 = vld [vmem:[#allocation5 + $0x1c] sm:$0xf]
    %v107 = vld [vmem:[#allocation5 + $0x20] sm:$0xf]
    %v108 = vld [vmem:[#allocation5 + $0x24] sm:$0xf]
    %v109 = vld [vmem:[#allocation5 + $0x28] sm:$0xf]
    %v110 = vld [vmem:[#allocation5 + $0x2c] sm:$0xf]
    %v111 = vld [vmem:[#allocation5 + $0x30] sm:$0xf]
    %v112 = vld [vmem:[#allocation5 + $0x34] sm:$0xf]
    %v113 = vld [vmem:[#allocation5 + $0x38] sm:$0xf]
    %v114 = vld [vmem:[#allocation5 + $0x3c] sm:$0xf]
    %v115 = vld [vmem:[#allocation7] sm:$0xf]
    %v116 = vld [vmem:[#allocation7 + $0x4] sm:$0xf]
    %v117 = vld [vmem:[#allocation7 + $0x8] sm:$0xf]
    %v118 = vld [vmem:[#allocation7 + $0xc] sm:$0xf]
    %v119 = vld [vmem:[#allocation7 + $0x10] sm:$0xf]
    %v120 = vld [vmem:[#allocation7 + $0x14] sm:$0xf]
    %v121 = vld [vmem:[#allocation7 + $0x18] sm:$0xf]
    %v122 = vld [vmem:[#allocation7 + $0x1c] sm:$0xf]
    %v123 = vld [vmem:[#allocation7 + $0x20] sm:$0xf]
    %v124 = vld [vmem:[#allocation7 + $0x24] sm:$0xf]
    %v125 = vld [vmem:[#allocation7 + $0x28] sm:$0xf]
    %v126 = vld [vmem:[#allocation7 + $0x2c] sm:$0xf]
    %v127 = vld [vmem:[#allocation7 + $0x30] sm:$0xf]
    %v128 = vld [vmem:[#allocation7 + $0x34] sm:$0xf]
    %v129 = vld [vmem:[#allocation7 + $0x38] sm:$0xf]
    %v130 = vld [vmem:[#allocation7 + $0x3c] sm:$0xf]
    %v131 = vld [vmem:[%s4] sm:$0x1]
    %v148 = vunpack.c.l.b16 %v99
    %v149 = vunpack.c.l.b16 %v100
    %v150 = vunpack.c.l.b16 %v101
    %v151 = vunpack.c.l.b16 %v102
    %v152 = vunpack.c.l.b16 %v103
    %v153 = vunpack.c.l.b16 %v104
    %v154 = vunpack.c.l.b16 %v105
    %v155 = vunpack.c.l.b16 %v106
    %v156 = vunpack.c.l.b16 %v107
    %v157 = vunpack.c.l.b16 %v108
    %v158 = vunpack.c.l.b16 %v109
    %v159 = vunpack.c.l.b16 %v110
    %v160 = vunpack.c.l.b16 %v111
    %v161 = vunpack.c.l.b16 %v112
    %v162 = vunpack.c.l.b16 %v113
    %v163 = vunpack.c.l.b16 %v114
    %v164 = vpack.c.b16 %v149, %v148
    %v165 = vpack.c.b16 %v151, %v150
    %v166 = vpack.c.b16 %v153, %v152
    %v167 = vpack.c.b16 %v155, %v154
    %v168 = vpack.c.b16 %v157, %v156
    %v169 = vpack.c.b16 %v159, %v158
    %v170 = vpack.c.b16 %v161, %v160
    %v171 = vpack.c.b16 %v163, %v162
    %v196 = vunpack.c.l.b16 %v115
    %v197 = vunpack.c.l.b16 %v116
    %v198 = vunpack.c.l.b16 %v117
    %v199 = vunpack.c.l.b16 %v118
    %v200 = vunpack.c.l.b16 %v119
    %v201 = vunpack.c.l.b16 %v120
    %v202 = vunpack.c.l.b16 %v121
    %v203 = vunpack.c.l.b16 %v122
    %v204 = vunpack.c.l.b16 %v123
    %v205 = vunpack.c.l.b16 %v124
    %v206 = vunpack.c.l.b16 %v125
    %v207 = vunpack.c.l.b16 %v126
    %v208 = vunpack.c.l.b16 %v127
    %v209 = vunpack.c.l.b16 %v128
    %v210 = vunpack.c.l.b16 %v129
    %v211 = vunpack.c.l.b16 %v130
    %v212 = vpack.c.b16 %v197, %v196
    %v213 = vpack.c.b16 %v199, %v198
    %v214 = vpack.c.b16 %v201, %v200
    %v215 = vpack.c.b16 %v203, %v202
    %v216 = vpack.c.b16 %v205, %v204
    %v217 = vpack.c.b16 %v207, %v206
    %v218 = vpack.c.b16 %v209, %v208
    %v219 = vpack.c.b16 %v211, %v210
    %228 = vmatprep.subr.bf16.mxu0 0
    %229 = vmatpush1.bf16.msra.mxu0 %v212
    %230 = vmatprep.subr.bf16.mxu0 0
    %231 = vmatpush1.bf16.msra.mxu0 %v213
    %232 = vmatprep.subr.bf16.mxu0 0
    %233 = vmatpush1.bf16.msra.mxu0 %v214
    %234 = vmatprep.subr.bf16.mxu0 0
    %235 = vmatpush1.bf16.msra.mxu0 %v215
    %236 = vmatprep.subr.bf16.mxu0 0
    %237 = vmatpush1.bf16.msra.mxu0 %v216
    %238 = vmatprep.subr.bf16.mxu0 0
    %239 = vmatpush1.bf16.msra.mxu0 %v217
    %240 = vmatprep.subr.bf16.mxu0 0
    %241 = vmatpush1.bf16.msra.mxu0 %v218
    %242 = vmatprep.subr.bf16.mxu0 0
    %243 = vmatpush1.bf16.msra.mxu0 %v219
    %244 = vmatprep.subr.bf16.mxu0 0
    %245 = vmatpush1.bf16.msra.mxu0 0
    %246 = vmatprep.subr.bf16.mxu0 0
    %247 = vmatpush1.bf16.msra.mxu0 0
    %248 = vmatprep.subr.bf16.mxu0 0
    %249 = vmatpush1.bf16.msra.mxu0 0
    %250 = vmatprep.subr.bf16.mxu0 0
    %251 = vmatpush1.bf16.msra.mxu0 0
    %252 = vmatprep.subr.bf16.mxu0 0
    %253 = vmatpush1.bf16.msra.mxu0 0
    %254 = vmatprep.subr.bf16.mxu0 0
    %255 = vmatpush1.bf16.msra.mxu0 0
    %256 = vmatprep.subr.bf16.mxu0 0
    %257 = vmatpush1.bf16.msra.mxu0 0
    %258 = vmatprep.subr.bf16.mxu0 0
    %259 = vmatpush1.bf16.msra.mxu0 0
    %260 = vmatprep.mubr.bf16.mxu0 0
    %261 = vmatmul.mubr.bf16.gmra.mrb[0].mxu0 %v164
    %v262 = vpop.f32.mrb[0].mxu0
    %v263 = vadd.f32 0.0, %v262
    %v264 = vpop.f32.mrb[0].mxu0
    %v265 = vpop.f32.mrb[0].mxu0
    %v266 = vadd.f32 0.0, %v265
    %v267 = vpop.f32.mrb[0].mxu0
    %268 = vmatprep.mubr.bf16.mxu0 0
    %269 = vmatmul.mubr.bf16.gmra.mrb[0].mxu0 %v165
    %v270 = vpop.f32.mrb[0].mxu0
    %v271 = vadd.f32 0.0, %v270
    %v272 = vpop.f32.mrb[0].mxu0
    %v273 = vpop.f32.mrb[0].mxu0
    %v274 = vadd.f32 0.0, %v273
    %v275 = vpop.f32.mrb[0].mxu0
    %276 = vmatprep.mubr.bf16.mxu0 0
    %277 = vmatmul.mubr.bf16.gmra.mrb[0].mxu0 %v166
    %v278 = vpop.f32.mrb[0].mxu0
    %v279 = vadd.f32 0.0, %v278
    %v280 = vpop.f32.mrb[0].mxu0
    %v281 = vpop.f32.mrb[0].mxu0
    %v282 = vadd.f32 0.0, %v281
    %v283 = vpop.f32.mrb[0].mxu0
    %284 = vmatprep.mubr.bf16.mxu0 0
    %285 = vmatmul.mubr.bf16.gmra.mrb[0].mxu0 %v167
    %v286 = vpop.f32.mrb[0].mxu0
    %v287 = vadd.f32 0.0, %v286
    %v288 = vpop.f32.mrb[0].mxu0
    %v289 = vpop.f32.mrb[0].mxu0
    %v290 = vadd.f32 0.0, %v289
    %v291 = vpop.f32.mrb[0].mxu0
    %292 = vmatprep.mubr.bf16.mxu0 0
    %293 = vmatmul.mubr.bf16.gmra.mrb[0].mxu0 %v168
    %v294 = vpop.f32.mrb[0].mxu0
    %v295 = vadd.f32 0.0, %v294
    %v296 = vpop.f32.mrb[0].mxu0
    %v297 = vpop.f32.mrb[0].mxu0
    %v298 = vadd.f32 0.0, %v297
    %v299 = vpop.f32.mrb[0].mxu0
    %300 = vmatprep.mubr.bf16.mxu0 0
    %301 = vmatmul.mubr.bf16.gmra.mrb[0].mxu0 %v169
    %v302 = vpop.f32.mrb[0].mxu0
    %v303 = vadd.f32 0.0, %v302
    %v304 = vpop.f32.mrb[0].mxu0
    %v305 = vpop.f32.mrb[0].mxu0
    %v306 = vadd.f32 0.0, %v305
    %v307 = vpop.f32.mrb[0].mxu0
    %308 = vmatprep.mubr.bf16.mxu0 0
    %309 = vmatmul.mubr.bf16.gmra.mrb[0].mxu0 %v170
    %v310 = vpop.f32.mrb[0].mxu0
    %v311 = vadd.f32 0.0, %v310
    %v312 = vpop.f32.mrb[0].mxu0
    %v313 = vpop.f32.mrb[0].mxu0
    %v314 = vadd.f32 0.0, %v313
    %v315 = vpop.f32.mrb[0].mxu0
    %316 = vmatprep.mubr.bf16.mxu0 0
    %317 = vmatmul.mubr.bf16.gmra.mrb[0].mxu0 %v171
    %v318 = vpop.f32.mrb[0].mxu0
    %v319 = vadd.f32 0.0, %v318
    %v320 = vpop.f32.mrb[0].mxu0
    %v321 = vpop.f32.mrb[0].mxu0
    %v322 = vadd.f32 0.0, %v321
    %v323 = vpop.f32.mrb[0].mxu0
    %324 = vdwg.mxu0
    %v325 = vpack.c.bf16 %v266, %v263
    %v326 = vpack.c.bf16 %v274, %v271
    %v327 = vpack.c.bf16 %v282, %v279
    %v328 = vpack.c.bf16 %v290, %v287
    %v329 = vpack.c.bf16 %v298, %v295
    %v330 = vpack.c.bf16 %v306, %v303
    %v331 = vpack.c.bf16 %v314, %v311
    %v332 = vpack.c.bf16 %v322, %v319
    %v334 = vlaneseq
    %v335 = vshrl.u32 %v334, 7
    %v336 = vsub.s32 0, %v335
    %v337 = vrot.slane %v131, %v336
    %v355 = vunpack.c.l.b16 %v83
    %v356 = vunpack.c.l.b16 %v84
    %v357 = vunpack.c.l.b16 %v85
    %v358 = vunpack.c.l.b16 %v86
    %v359 = vunpack.c.l.b16 %v87
    %v360 = vunpack.c.l.b16 %v88
    %v361 = vunpack.c.l.b16 %v89
    %v362 = vunpack.c.l.b16 %v90
    %v363 = vunpack.c.l.b16 %v91
    %v364 = vunpack.c.l.b16 %v92
    %v365 = vunpack.c.l.b16 %v93
    %v366 = vunpack.c.l.b16 %v94
    %v367 = vunpack.c.l.b16 %v95
    %v368 = vunpack.c.l.b16 %v96
    %v369 = vunpack.c.l.b16 %v97
    %v370 = vunpack.c.l.b16 %v98
    %v371 = vpack.c.b16 %v356, %v355
    %v372 = vpack.c.b16 %v358, %v357
    %v373 = vpack.c.b16 %v360, %v359
    %v374 = vpack.c.b16 %v362, %v361
    %v375 = vpack.c.b16 %v364, %v363
    %v376 = vpack.c.b16 %v366, %v365
    %v377 = vpack.c.b16 %v368, %v367
    %v378 = vpack.c.b16 %v370, %v369
    %387 = vmatprep.subr.bf16.mxu0 0
    %388 = vmatpush1.bf16.msra.mxu0 %v325
    %389 = vmatprep.subr.bf16.mxu0 0
    %390 = vmatpush1.bf16.msra.mxu0 %v326
    %391 = vmatprep.subr.bf16.mxu0 0
    %392 = vmatpush1.bf16.msra.mxu0 %v327
    %393 = vmatprep.subr.bf16.mxu0 0
    %394 = vmatpush1.bf16.msra.mxu0 %v328
    %395 = vmatprep.subr.bf16.mxu0 0
    %396 = vmatpush1.bf16.msra.mxu0 %v329
    %397 = vmatprep.subr.bf16.mxu0 0
    %398 = vmatpush1.bf16.msra.mxu0 %v330
    %399 = vmatprep.subr.bf16.mxu0 0
    %400 = vmatpush1.bf16.msra.mxu0 %v331
    %401 = vmatprep.subr.bf16.mxu0 0
    %402 = vmatpush1.bf16.msra.mxu0 %v332
    %403 = vmatprep.subr.bf16.mxu0 0
    %404 = vmatpush1.bf16.msra.mxu0 0
    %405 = vmatprep.subr.bf16.mxu0 0
    %406 = vmatpush1.bf16.msra.mxu0 0
    %407 = vmatprep.subr.bf16.mxu0 0
    %408 = vmatpush1.bf16.msra.mxu0 0
    %409 = vmatprep.subr.bf16.mxu0 0
    %410 = vmatpush1.bf16.msra.mxu0 0
    %411 = vmatprep.subr.bf16.mxu0 0
    %412 = vmatpush1.bf16.msra.mxu0 0
    %413 = vmatprep.subr.bf16.mxu0 0
    %414 = vmatpush1.bf16.msra.mxu0 0
    %415 = vmatprep.subr.bf16.mxu0 0
    %416 = vmatpush1.bf16.msra.mxu0 0
    %417 = vmatprep.subr.bf16.mxu0 0
    %418 = vmatpush1.bf16.msra.mxu0 0
    %419 = vmatprep.mubr.bf16.mxu0 0
    %420 = vmatmul.mubr.bf16.gmra.mrb[0].mxu0 %v371
    %v421 = vpop.f32.mrb[0].mxu0
    %v422 = vadd.f32 %v337, %v421
    %v423 = vpop.f32.mrb[0].mxu0
    %v424 = vpop.f32.mrb[0].mxu0
    %v425 = vadd.f32 %v337, %v424
    %v426 = vpop.f32.mrb[0].mxu0
    %427 = vmatprep.mubr.bf16.mxu0 0
    %428 = vmatmul.mubr.bf16.gmra.mrb[0].mxu0 %v372
    %v429 = vpop.f32.mrb[0].mxu0
    %v430 = vadd.f32 %v337, %v429
    %v431 = vpop.f32.mrb[0].mxu0
    %v432 = vpop.f32.mrb[0].mxu0
    %v433 = vadd.f32 %v337, %v432
    %v434 = vpop.f32.mrb[0].mxu0
    %435 = vmatprep.mubr.bf16.mxu0 0
    %436 = vmatmul.mubr.bf16.gmra.mrb[0].mxu0 %v373
    %v437 = vpop.f32.mrb[0].mxu0
    %v438 = vadd.f32 %v337, %v437
    %v439 = vpop.f32.mrb[0].mxu0
    %v440 = vpop.f32.mrb[0].mxu0
    %v441 = vadd.f32 %v337, %v440
    %v442 = vpop.f32.mrb[0].mxu0
    %443 = vmatprep.mubr.bf16.mxu0 0
    %444 = vmatmul.mubr.bf16.gmra.mrb[0].mxu0 %v374
    %v445 = vpop.f32.mrb[0].mxu0
    %v446 = vadd.f32 %v337, %v445
    %v447 = vpop.f32.mrb[0].mxu0
    %v448 = vpop.f32.mrb[0].mxu0
    %v449 = vadd.f32 %v337, %v448
    %v450 = vpop.f32.mrb[0].mxu0
    %451 = vmatprep.mubr.bf16.mxu0 0
    %452 = vmatmul.mubr.bf16.gmra.mrb[0].mxu0 %v375
    %v453 = vpop.f32.mrb[0].mxu0
    %v454 = vadd.f32 %v337, %v453
    %v455 = vpop.f32.mrb[0].mxu0
    %v456 = vpop.f32.mrb[0].mxu0
    %v457 = vadd.f32 %v337, %v456
    %v458 = vpop.f32.mrb[0].mxu0
    %459 = vmatprep.mubr.bf16.mxu0 0
    %460 = vmatmul.mubr.bf16.gmra.mrb[0].mxu0 %v376
    %v461 = vpop.f32.mrb[0].mxu0
    %v462 = vadd.f32 %v337, %v461
    %v463 = vpop.f32.mrb[0].mxu0
    %v464 = vpop.f32.mrb[0].mxu0
    %v465 = vadd.f32 %v337, %v464
    %v466 = vpop.f32.mrb[0].mxu0
    %467 = vmatprep.mubr.bf16.mxu0 0
    %468 = vmatmul.mubr.bf16.gmra.mrb[0].mxu0 %v377
    %v469 = vpop.f32.mrb[0].mxu0
    %v470 = vadd.f32 %v337, %v469
    %v471 = vpop.f32.mrb[0].mxu0
    %v472 = vpop.f32.mrb[0].mxu0
    %v473 = vadd.f32 %v337, %v472
    %v474 = vpop.f32.mrb[0].mxu0
    %475 = vmatprep.mubr.bf16.mxu0 0
    %476 = vmatmul.mubr.bf16.gmra.mrb[0].mxu0 %v378
    %v477 = vpop.f32.mrb[0].mxu0
    %v478 = vadd.f32 %v337, %v477
    %v479 = vpop.f32.mrb[0].mxu0
    %v480 = vpop.f32.mrb[0].mxu0
    %v481 = vadd.f32 %v337, %v480
    %v482 = vpop.f32.mrb[0].mxu0
    %483 = vdwg.mxu0
    %v484 = vmax.f32 %v422, 0.0
    %v485 = vmax.f32 %v425, 0.0
    %v486 = vmax.f32 %v430, 0.0
    %v487 = vmax.f32 %v433, 0.0
    %v488 = vmax.f32 %v438, 0.0
    %v489 = vmax.f32 %v441, 0.0
    %v490 = vmax.f32 %v446, 0.0
    %v491 = vmax.f32 %v449, 0.0
    %v492 = vmax.f32 %v454, 0.0
    %v493 = vmax.f32 %v457, 0.0
    %v494 = vmax.f32 %v462, 0.0
    %v495 = vmax.f32 %v465, 0.0
    %v496 = vmax.f32 %v470, 0.0
    %v497 = vmax.f32 %v473, 0.0
    %v498 = vmax.f32 %v478, 0.0
    %v499 = vmax.f32 %v481, 0.0
    %v500 = vpack.c.bf16 %v485, %v484
    %v501 = vpack.c.bf16 %v487, %v486
    %v502 = vpack.c.bf16 %v489, %v488
    %v503 = vpack.c.bf16 %v491, %v490
    %v504 = vpack.c.bf16 %v493, %v492
    %v505 = vpack.c.bf16 %v495, %v494
    %v506 = vpack.c.bf16 %v497, %v496
    %v507 = vpack.c.bf16 %v499, %v498
    %s508 = scalar_lea.vmem [#allocation7], 64
    %v509 = vld [vmem:[%s508] sm:$0xf]
    %v510 = vld [vmem:[%s508 + $0x4] sm:$0xf]
    %v511 = vld [vmem:[%s508 + $0x8] sm:$0xf]
    %v512 = vld [vmem:[%s508 + $0xc] sm:$0xf]
    %v513 = vld [vmem:[%s508 + $0x10] sm:$0xf]
    %v514 = vld [vmem:[%s508 + $0x14] sm:$0xf]
    %v515 = vld [vmem:[%s508 + $0x18] sm:$0xf]
    %v516 = vld [vmem:[%s508 + $0x1c] sm:$0xf]
    %v517 = vld [vmem:[%s508 + $0x20] sm:$0xf]
    %v518 = vld [vmem:[%s508 + $0x24] sm:$0xf]
    %v519 = vld [vmem:[%s508 + $0x28] sm:$0xf]
    %v520 = vld [vmem:[%s508 + $0x2c] sm:$0xf]
    %v521 = vld [vmem:[%s508 + $0x30] sm:$0xf]
    %v522 = vld [vmem:[%s508 + $0x34] sm:$0xf]
    %v523 = vld [vmem:[%s508 + $0x38] sm:$0xf]
    %v524 = vld [vmem:[%s508 + $0x3c] sm:$0xf]
    %s525 = scalar_lea.vmem %s4, 1
    %v526 = vld [vmem:[%s525] sm:$0x1]
    %v543 = vunpack.c.l.b16 %v509
    %v544 = vunpack.c.l.b16 %v510
    %v545 = vunpack.c.l.b16 %v511
    %v546 = vunpack.c.l.b16 %v512
    %v547 = vunpack.c.l.b16 %v513
    %v548 = vunpack.c.l.b16 %v514
    %v549 = vunpack.c.l.b16 %v515
    %v550 = vunpack.c.l.b16 %v516
    %v551 = vunpack.c.l.b16 %v517
    %v552 = vunpack.c.l.b16 %v518
    %v553 = vunpack.c.l.b16 %v519
    %v554 = vunpack.c.l.b16 %v520
    %v555 = vunpack.c.l.b16 %v521
    %v556 = vunpack.c.l.b16 %v522
    %v557 = vunpack.c.l.b16 %v523
    %v558 = vunpack.c.l.b16 %v524
    %v559 = vpack.c.b16 %v544, %v543
    %v560 = vpack.c.b16 %v546, %v545
    %v561 = vpack.c.b16 %v548, %v547
    %v562 = vpack.c.b16 %v550, %v549
    %v563 = vpack.c.b16 %v552, %v551
    %v564 = vpack.c.b16 %v554, %v553
    %v565 = vpack.c.b16 %v556, %v555
    %v566 = vpack.c.b16 %v558, %v557
    %575 = vmatprep.subr.bf16.mxu0 0
    %576 = vmatpush1.bf16.msra.mxu0 %v559
    %577 = vmatprep.subr.bf16.mxu0 0
    %578 = vmatpush1.bf16.msra.mxu0 %v560
    %579 = vmatprep.subr.bf16.mxu0 0
    %580 = vmatpush1.bf16.msra.mxu0 %v561
    %581 = vmatprep.subr.bf16.mxu0 0
    %582 = vmatpush1.bf16.msra.mxu0 %v562
    %583 = vmatprep.subr.bf16.mxu0 0
    %584 = vmatpush1.bf16.msra.mxu0 %v563
    %585 = vmatprep.subr.bf16.mxu0 0
    %586 = vmatpush1.bf16.msra.mxu0 %v564
    %587 = vmatprep.subr.bf16.mxu0 0
    %588 = vmatpush1.bf16.msra.mxu0 %v565
    %589 = vmatprep.subr.bf16.mxu0 0
    %590 = vmatpush1.bf16.msra.mxu0 %v566
    %591 = vmatprep.subr.bf16.mxu0 0
    %592 = vmatpush1.bf16.msra.mxu0 0
    %593 = vmatprep.subr.bf16.mxu0 0
    %594 = vmatpush1.bf16.msra.mxu0 0
    %595 = vmatprep.subr.bf16.mxu0 0
    %596 = vmatpush1.bf16.msra.mxu0 0
    %597 = vmatprep.subr.bf16.mxu0 0
    %598 = vmatpush1.bf16.msra.mxu0 0
    %599 = vmatprep.subr.bf16.mxu0 0
    %600 = vmatpush1.bf16.msra.mxu0 0
    %601 = vmatprep.subr.bf16.mxu0 0
    %602 = vmatpush1.bf16.msra.mxu0 0
    %603 = vmatprep.subr.bf16.mxu0 0
    %604 = vmatpush1.bf16.msra.mxu0 0
    %605 = vmatprep.subr.bf16.mxu0 0
    %606 = vmatpush1.bf16.msra.mxu0 0
    %607 = vmatprep.mubr.bf16.mxu0 0
    %608 = vmatmul.mubr.bf16.gmra.mrb[0].mxu0 %v500
    %v609 = vpop.f32.mrb[0].mxu0
    %v610 = vadd.f32 0.0, %v609
    %v611 = vpop.f32.mrb[0].mxu0
    %v612 = vpop.f32.mrb[0].mxu0
    %v613 = vadd.f32 0.0, %v612
    %v614 = vpop.f32.mrb[0].mxu0
    %615 = vmatprep.mubr.bf16.mxu0 0
    %616 = vmatmul.mubr.bf16.gmra.mrb[0].mxu0 %v501
    %v617 = vpop.f32.mrb[0].mxu0
    %v618 = vadd.f32 0.0, %v617
    %v619 = vpop.f32.mrb[0].mxu0
    %v620 = vpop.f32.mrb[0].mxu0
    %v621 = vadd.f32 0.0, %v620
    %v622 = vpop.f32.mrb[0].mxu0
    %623 = vmatprep.mubr.bf16.mxu0 0
    %624 = vmatmul.mubr.bf16.gmra.mrb[0].mxu0 %v502
    %v625 = vpop.f32.mrb[0].mxu0
    %v626 = vadd.f32 0.0, %v625
    %v627 = vpop.f32.mrb[0].mxu0
    %v628 = vpop.f32.mrb[0].mxu0
    %v629 = vadd.f32 0.0, %v628
    %v630 = vpop.f32.mrb[0].mxu0
    %631 = vmatprep.mubr.bf16.mxu0 0
    %632 = vmatmul.mubr.bf16.gmra.mrb[0].mxu0 %v503
    %v633 = vpop.f32.mrb[0].mxu0
    %v634 = vadd.f32 0.0, %v633
    %v635 = vpop.f32.mrb[0].mxu0
    %v636 = vpop.f32.mrb[0].mxu0
    %v637 = vadd.f32 0.0, %v636
    %v638 = vpop.f32.mrb[0].mxu0
    %639 = vmatprep.mubr.bf16.mxu0 0
    %640 = vmatmul.mubr.bf16.gmra.mrb[0].mxu0 %v504
    %v641 = vpop.f32.mrb[0].mxu0
    %v642 = vadd.f32 0.0, %v641
    %v643 = vpop.f32.mrb[0].mxu0
    %v644 = vpop.f32.mrb[0].mxu0
    %v645 = vadd.f32 0.0, %v644
    %v646 = vpop.f32.mrb[0].mxu0
    %647 = vmatprep.mubr.bf16.mxu0 0
    %648 = vmatmul.mubr.bf16.gmra.mrb[0].mxu0 %v505
    %v649 = vpop.f32.mrb[0].mxu0
    %v650 = vadd.f32 0.0, %v649
    %v651 = vpop.f32.mrb[0].mxu0
    %v652 = vpop.f32.mrb[0].mxu0
    %v653 = vadd.f32 0.0, %v652
    %v654 = vpop.f32.mrb[0].mxu0
    %655 = vmatprep.mubr.bf16.mxu0 0
    %656 = vmatmul.mubr.bf16.gmra.mrb[0].mxu0 %v506
    %v657 = vpop.f32.mrb[0].mxu0
    %v658 = vadd.f32 0.0, %v657
    %v659 = vpop.f32.mrb[0].mxu0
    %v660 = vpop.f32.mrb[0].mxu0
    %v661 = vadd.f32 0.0, %v660
    %v662 = vpop.f32.mrb[0].mxu0
    %663 = vmatprep.mubr.bf16.mxu0 0
    %664 = vmatmul.mubr.bf16.gmra.mrb[0].mxu0 %v507
    %v665 = vpop.f32.mrb[0].mxu0
    %v666 = vadd.f32 0.0, %v665
    %v667 = vpop.f32.mrb[0].mxu0
    %v668 = vpop.f32.mrb[0].mxu0
    %v669 = vadd.f32 0.0, %v668
    %v670 = vpop.f32.mrb[0].mxu0
    %671 = vdwg.mxu0
    %v672 = vpack.c.bf16 %v613, %v610
    %v673 = vpack.c.bf16 %v621, %v618
    %v674 = vpack.c.bf16 %v629, %v626
    %v675 = vpack.c.bf16 %v637, %v634
    %v676 = vpack.c.bf16 %v645, %v642
    %v677 = vpack.c.bf16 %v653, %v650
    %v678 = vpack.c.bf16 %v661, %v658
    %v679 = vpack.c.bf16 %v669, %v666
    %v681 = vlaneseq
    %v682 = vshrl.u32 %v681, 7
    %v683 = vsub.s32 0, %v682
    %v684 = vrot.slane %v526, %v683
    %686 = vmatprep.subr.bf16.mxu0 0
    %687 = vmatpush1.bf16.msra.mxu0 %v672
    %688 = vmatprep.subr.bf16.mxu0 0
    %689 = vmatpush1.bf16.msra.mxu0 %v673
    %690 = vmatprep.subr.bf16.mxu0 0
    %691 = vmatpush1.bf16.msra.mxu0 %v674
    %692 = vmatprep.subr.bf16.mxu0 0
    %693 = vmatpush1.bf16.msra.mxu0 %v675
    %694 = vmatprep.subr.bf16.mxu0 0
    %695 = vmatpush1.bf16.msra.mxu0 %v676
    %696 = vmatprep.subr.bf16.mxu0 0
    %697 = vmatpush1.bf16.msra.mxu0 %v677
    %698 = vmatprep.subr.bf16.mxu0 0
    %699 = vmatpush1.bf16.msra.mxu0 %v678
    %700 = vmatprep.subr.bf16.mxu0 0
    %701 = vmatpush1.bf16.msra.mxu0 %v679
    %702 = vmatprep.subr.bf16.mxu0 0
    %703 = vmatpush1.bf16.msra.mxu0 0
    %704 = vmatprep.subr.bf16.mxu0 0
    %705 = vmatpush1.bf16.msra.mxu0 0
    %706 = vmatprep.subr.bf16.mxu0 0
    %707 = vmatpush1.bf16.msra.mxu0 0
    %708 = vmatprep.subr.bf16.mxu0 0
    %709 = vmatpush1.bf16.msra.mxu0 0
    %710 = vmatprep.subr.bf16.mxu0 0
    %711 = vmatpush1.bf16.msra.mxu0 0
    %712 = vmatprep.subr.bf16.mxu0 0
    %713 = vmatpush1.bf16.msra.mxu0 0
    %714 = vmatprep.subr.bf16.mxu0 0
    %715 = vmatpush1.bf16.msra.mxu0 0
    %716 = vmatprep.subr.bf16.mxu0 0
    %717 = vmatpush1.bf16.msra.mxu0 0
    %718 = vmatprep.mubr.bf16.mxu0 0
    %719 = vmatmul.mubr.bf16.gmra.mrb[0].mxu0 %v371
    %v720 = vpop.f32.mrb[0].mxu0
    %v721 = vadd.f32 %v684, %v720
    %v722 = vpop.f32.mrb[0].mxu0
    %v723 = vpop.f32.mrb[0].mxu0
    %v724 = vadd.f32 %v684, %v723
    %v725 = vpop.f32.mrb[0].mxu0
    %726 = vmatprep.mubr.bf16.mxu0 0
    %727 = vmatmul.mubr.bf16.gmra.mrb[0].mxu0 %v372
    %v728 = vpop.f32.mrb[0].mxu0
    %v729 = vadd.f32 %v684, %v728
    %v730 = vpop.f32.mrb[0].mxu0
    %v731 = vpop.f32.mrb[0].mxu0
    %v732 = vadd.f32 %v684, %v731
    %v733 = vpop.f32.mrb[0].mxu0
    %734 = vmatprep.mubr.bf16.mxu0 0
    %735 = vmatmul.mubr.bf16.gmra.mrb[0].mxu0 %v373
    %v736 = vpop.f32.mrb[0].mxu0
    %v737 = vadd.f32 %v684, %v736
    %v738 = vpop.f32.mrb[0].mxu0
    %v739 = vpop.f32.mrb[0].mxu0
    %v740 = vadd.f32 %v684, %v739
    %v741 = vpop.f32.mrb[0].mxu0
    %742 = vmatprep.mubr.bf16.mxu0 0
    %743 = vmatmul.mubr.bf16.gmra.mrb[0].mxu0 %v374
    %v744 = vpop.f32.mrb[0].mxu0
    %v745 = vadd.f32 %v684, %v744
    %v746 = vpop.f32.mrb[0].mxu0
    %v747 = vpop.f32.mrb[0].mxu0
    %v748 = vadd.f32 %v684, %v747
    %v749 = vpop.f32.mrb[0].mxu0
    %750 = vmatprep.mubr.bf16.mxu0 0
    %751 = vmatmul.mubr.bf16.gmra.mrb[0].mxu0 %v375
    %v752 = vpop.f32.mrb[0].mxu0
    %v753 = vadd.f32 %v684, %v752
    %v754 = vpop.f32.mrb[0].mxu0
    %v755 = vpop.f32.mrb[0].mxu0
    %v756 = vadd.f32 %v684, %v755
    %v757 = vpop.f32.mrb[0].mxu0
    %758 = vmatprep.mubr.bf16.mxu0 0
    %759 = vmatmul.mubr.bf16.gmra.mrb[0].mxu0 %v376
    %v760 = vpop.f32.mrb[0].mxu0
    %v761 = vadd.f32 %v684, %v760
    %v762 = vpop.f32.mrb[0].mxu0
    %v763 = vpop.f32.mrb[0].mxu0
    %v764 = vadd.f32 %v684, %v763
    %v765 = vpop.f32.mrb[0].mxu0
    %766 = vmatprep.mubr.bf16.mxu0 0
    %767 = vmatmul.mubr.bf16.gmra.mrb[0].mxu0 %v377
    %v768 = vpop.f32.mrb[0].mxu0
    %v769 = vadd.f32 %v684, %v768
    %v770 = vpop.f32.mrb[0].mxu0
    %v771 = vpop.f32.mrb[0].mxu0
    %v772 = vadd.f32 %v684, %v771
    %v773 = vpop.f32.mrb[0].mxu0
    %774 = vmatprep.mubr.bf16.mxu0 0
    %775 = vmatmul.mubr.bf16.gmra.mrb[0].mxu0 %v378
    %v776 = vpop.f32.mrb[0].mxu0
    %v777 = vadd.f32 %v684, %v776
    %v778 = vpop.f32.mrb[0].mxu0
    %v779 = vpop.f32.mrb[0].mxu0
    %v780 = vadd.f32 %v684, %v779
    %v781 = vpop.f32.mrb[0].mxu0
    %782 = vdwg.mxu0
    %v783 = vpack.c.bf16 %v724, %v721
    %v784 = vpack.c.bf16 %v732, %v729
    %v785 = vpack.c.bf16 %v740, %v737
    %v786 = vpack.c.bf16 %v748, %v745
    %v787 = vpack.c.bf16 %v756, %v753
    %v788 = vpack.c.bf16 %v764, %v761
    %v789 = vpack.c.bf16 %v772, %v769
    %v790 = vpack.c.bf16 %v780, %v777
    %v791 = vld [vmem:[#allocation8] sm:$0xff]
    %v792 = vld [vmem:[#allocation8 + $0x8] sm:$0xff]
    %v793 = vld [vmem:[#allocation8 + $0x10] sm:$0xff]
    %v794 = vld [vmem:[#allocation8 + $0x18] sm:$0xff]
    %v795 = vld [vmem:[#allocation8 + $0x20] sm:$0xff]
    %v796 = vld [vmem:[#allocation8 + $0x28] sm:$0xff]
    %v797 = vld [vmem:[#allocation8 + $0x30] sm:$0xff]
    %v798 = vld [vmem:[#allocation8 + $0x38] sm:$0xff]
    %v799 = vld [vmem:[#allocation8 + $0x40] sm:$0xff]
    %v800 = vld [vmem:[#allocation8 + $0x48] sm:$0xff]
    %v801 = vld [vmem:[#allocation8 + $0x50] sm:$0xff]
    %v802 = vld [vmem:[#allocation8 + $0x58] sm:$0xff]
    %v803 = vld [vmem:[#allocation8 + $0x60] sm:$0xff]
    %v804 = vld [vmem:[#allocation8 + $0x68] sm:$0xff]
    %v805 = vld [vmem:[#allocation8 + $0x70] sm:$0xff]
    %v806 = vld [vmem:[#allocation8 + $0x78] sm:$0xff]
    %v807 = vld [vmem:[%s5] sm:$0x3]
    %v824 = vunpack.c.l.b16 %v791
    %v825 = vunpack.c.h.b16 %v791
    %v826 = vunpack.c.l.b16 %v792
    %v827 = vunpack.c.h.b16 %v792
    %v828 = vunpack.c.l.b16 %v793
    %v829 = vunpack.c.h.b16 %v793
    %v830 = vunpack.c.l.b16 %v794
    %v831 = vunpack.c.h.b16 %v794
    %v832 = vunpack.c.l.b16 %v795
    %v833 = vunpack.c.h.b16 %v795
    %v834 = vunpack.c.l.b16 %v796
    %v835 = vunpack.c.h.b16 %v796
    %v836 = vunpack.c.l.b16 %v797
    %v837 = vunpack.c.h.b16 %v797
    %v838 = vunpack.c.l.b16 %v798
    %v839 = vunpack.c.h.b16 %v798
    %v840 = vunpack.c.l.b16 %v799
    %v841 = vunpack.c.h.b16 %v799
    %v842 = vunpack.c.l.b16 %v800
    %v843 = vunpack.c.h.b16 %v800
    %v844 = vunpack.c.l.b16 %v801
    %v845 = vunpack.c.h.b16 %v801
    %v846 = vunpack.c.l.b16 %v802
    %v847 = vunpack.c.h.b16 %v802
    %v848 = vunpack.c.l.b16 %v803
    %v849 = vunpack.c.h.b16 %v803
    %v850 = vunpack.c.l.b16 %v804
    %v851 = vunpack.c.h.b16 %v804
    %v852 = vunpack.c.l.b16 %v805
    %v853 = vunpack.c.h.b16 %v805
    %v854 = vunpack.c.l.b16 %v806
    %v855 = vunpack.c.h.b16 %v806
    %v856 = vpack.c.b16 %v826, %v824
    %v857 = vpack.c.b16 %v827, %v825
    %v858 = vpack.c.b16 %v830, %v828
    %v859 = vpack.c.b16 %v831, %v829
    %v860 = vpack.c.b16 %v834, %v832
    %v861 = vpack.c.b16 %v835, %v833
    %v862 = vpack.c.b16 %v838, %v836
    %v863 = vpack.c.b16 %v839, %v837
    %v864 = vpack.c.b16 %v842, %v840
    %v865 = vpack.c.b16 %v843, %v841
    %v866 = vpack.c.b16 %v846, %v844
    %v867 = vpack.c.b16 %v847, %v845
    %v868 = vpack.c.b16 %v850, %v848
    %v869 = vpack.c.b16 %v851, %v849
    %v870 = vpack.c.b16 %v854, %v852
    %v871 = vpack.c.b16 %v855, %v853
    %888 = vmatprep.subr.bf16.mxu0 %v857
    %889 = vmatpush1.bf16.msra.mxu0 %v856
    %890 = vmatprep.subr.bf16.mxu0 %v859
    %891 = vmatpush1.bf16.msra.mxu0 %v858
    %892 = vmatprep.subr.bf16.mxu0 %v861
    %893 = vmatpush1.bf16.msra.mxu0 %v860
    %894 = vmatprep.subr.bf16.mxu0 %v863
    %895 = vmatpush1.bf16.msra.mxu0 %v862
    %896 = vmatprep.subr.bf16.mxu0 %v865
    %897 = vmatpush1.bf16.msra.mxu0 %v864
    %898 = vmatprep.subr.bf16.mxu0 %v867
    %899 = vmatpush1.bf16.msra.mxu0 %v866
    %900 = vmatprep.subr.bf16.mxu0 %v869
    %901 = vmatpush1.bf16.msra.mxu0 %v868
    %902 = vmatprep.subr.bf16.mxu0 %v871
    %903 = vmatpush1.bf16.msra.mxu0 %v870
    %904 = vmatprep.subr.bf16.mxu0 0
    %905 = vmatpush1.bf16.msra.mxu0 0
    %906 = vmatprep.subr.bf16.mxu0 0
    %907 = vmatpush1.bf16.msra.mxu0 0
    %908 = vmatprep.subr.bf16.mxu0 0
    %909 = vmatpush1.bf16.msra.mxu0 0
    %910 = vmatprep.subr.bf16.mxu0 0
    %911 = vmatpush1.bf16.msra.mxu0 0
    %912 = vmatprep.subr.bf16.mxu0 0
    %913 = vmatpush1.bf16.msra.mxu0 0
    %914 = vmatprep.subr.bf16.mxu0 0
    %915 = vmatpush1.bf16.msra.mxu0 0
    %916 = vmatprep.subr.bf16.mxu0 0
    %917 = vmatpush1.bf16.msra.mxu0 0
    %918 = vmatprep.subr.bf16.mxu0 0
    %919 = vmatpush1.bf16.msra.mxu0 0
    %920 = vmatprep.mubr.bf16.mxu0 0
    %921 = vmatmul.mubr.bf16.gmra.mrb[0].mxu0 %v783
    %v922 = vpop.f32.mrb[0].mxu0
    %v923 = vadd.f32 0.0, %v922
    %v924 = vpop.f32.mrb[0].mxu0
    %v925 = vadd.f32 0.0, %v924
    %v926 = vpop.f32.mrb[0].mxu0
    %v927 = vadd.f32 0.0, %v926
    %v928 = vpop.f32.mrb[0].mxu0
    %v929 = vadd.f32 0.0, %v928
    %930 = vmatprep.mubr.bf16.mxu0 0
    %931 = vmatmul.mubr.bf16.gmra.mrb[0].mxu0 %v784
    %v932 = vpop.f32.mrb[0].mxu0
    %v933 = vadd.f32 0.0, %v932
    %v934 = vpop.f32.mrb[0].mxu0
    %v935 = vadd.f32 0.0, %v934
    %v936 = vpop.f32.mrb[0].mxu0
    %v937 = vadd.f32 0.0, %v936
    %v938 = vpop.f32.mrb[0].mxu0
    %v939 = vadd.f32 0.0, %v938
    %940 = vmatprep.mubr.bf16.mxu0 0
    %941 = vmatmul.mubr.bf16.gmra.mrb[0].mxu0 %v785
    %v942 = vpop.f32.mrb[0].mxu0
    %v943 = vadd.f32 0.0, %v942
    %v944 = vpop.f32.mrb[0].mxu0
    %v945 = vadd.f32 0.0, %v944
    %v946 = vpop.f32.mrb[0].mxu0
    %v947 = vadd.f32 0.0, %v946
    %v948 = vpop.f32.mrb[0].mxu0
    %v949 = vadd.f32 0.0, %v948
    %950 = vmatprep.mubr.bf16.mxu0 0
    %951 = vmatmul.mubr.bf16.gmra.mrb[0].mxu0 %v786
    %v952 = vpop.f32.mrb[0].mxu0
    %v953 = vadd.f32 0.0, %v952
    %v954 = vpop.f32.mrb[0].mxu0
    %v955 = vadd.f32 0.0, %v954
    %v956 = vpop.f32.mrb[0].mxu0
    %v957 = vadd.f32 0.0, %v956
    %v958 = vpop.f32.mrb[0].mxu0
    %v959 = vadd.f32 0.0, %v958
    %960 = vmatprep.mubr.bf16.mxu0 0
    %961 = vmatmul.mubr.bf16.gmra.mrb[0].mxu0 %v787
    %v962 = vpop.f32.mrb[0].mxu0
    %v963 = vadd.f32 0.0, %v962
    %v964 = vpop.f32.mrb[0].mxu0
    %v965 = vadd.f32 0.0, %v964
    %v966 = vpop.f32.mrb[0].mxu0
    %v967 = vadd.f32 0.0, %v966
    %v968 = vpop.f32.mrb[0].mxu0
    %v969 = vadd.f32 0.0, %v968
    %970 = vmatprep.mubr.bf16.mxu0 0
    %971 = vmatmul.mubr.bf16.gmra.mrb[0].mxu0 %v788
    %v972 = vpop.f32.mrb[0].mxu0
    %v973 = vadd.f32 0.0, %v972
    %v974 = vpop.f32.mrb[0].mxu0
    %v975 = vadd.f32 0.0, %v974
    %v976 = vpop.f32.mrb[0].mxu0
    %v977 = vadd.f32 0.0, %v976
    %v978 = vpop.f32.mrb[0].mxu0
    %v979 = vadd.f32 0.0, %v978
    %980 = vmatprep.mubr.bf16.mxu0 0
    %981 = vmatmul.mubr.bf16.gmra.mrb[0].mxu0 %v789
    %v982 = vpop.f32.mrb[0].mxu0
    %v983 = vadd.f32 0.0, %v982
    %v984 = vpop.f32.mrb[0].mxu0
    %v985 = vadd.f32 0.0, %v984
    %v986 = vpop.f32.mrb[0].mxu0
    %v987 = vadd.f32 0.0, %v986
    %v988 = vpop.f32.mrb[0].mxu0
    %v989 = vadd.f32 0.0, %v988
    %990 = vmatprep.mubr.bf16.mxu0 0
    %991 = vmatmul.mubr.bf16.gmra.mrb[0].mxu0 %v790
    %v992 = vpop.f32.mrb[0].mxu0
    %v993 = vadd.f32 0.0, %v992
    %v994 = vpop.f32.mrb[0].mxu0
    %v995 = vadd.f32 0.0, %v994
    %v996 = vpop.f32.mrb[0].mxu0
    %v997 = vadd.f32 0.0, %v996
    %v998 = vpop.f32.mrb[0].mxu0
    %v999 = vadd.f32 0.0, %v998
    %1000 = vdwg.mxu0
    %v1001 = vpack.c.bf16 %v927, %v923
    %v1002 = vpack.c.bf16 %v929, %v925
    %v1003 = vpack.c.bf16 %v937, %v933
    %v1004 = vpack.c.bf16 %v939, %v935
    %v1005 = vpack.c.bf16 %v947, %v943
    %v1006 = vpack.c.bf16 %v949, %v945
    %v1007 = vpack.c.bf16 %v957, %v953
    %v1008 = vpack.c.bf16 %v959, %v955
    %v1009 = vpack.c.bf16 %v967, %v963
    %v1010 = vpack.c.bf16 %v969, %v965
    %v1011 = vpack.c.bf16 %v977, %v973
    %v1012 = vpack.c.bf16 %v979, %v975
    %v1013 = vpack.c.bf16 %v987, %v983
    %v1014 = vpack.c.bf16 %v989, %v985
    %v1015 = vpack.c.bf16 %v997, %v993
    %v1016 = vpack.c.bf16 %v999, %v995
    %v1018 = vlaneseq
    %v1019 = vshrl.u32 %v1018, 7
    %v1020 = vsub.s32 0, %v1019
    %v1021 = vrot.slane %v807, %v1020
    %v1022 = vlaneseq
    %v1023 = vshrl.u32 %v1022, 7
    %v1024 = vsub.s32 1, %v1023
    %v1025 = vrot.slane %v807, %v1024
    %1028 = vmatprep.subr.bf16.mxu0 %v1002
    %1029 = vmatpush1.bf16.msra.mxu0 %v1001
    %1030 = vmatprep.subr.bf16.mxu0 %v1004
    %1031 = vmatpush1.bf16.msra.mxu0 %v1003
    %1032 = vmatprep.subr.bf16.mxu0 %v1006
    %1033 = vmatpush1.bf16.msra.mxu0 %v1005
    %1034 = vmatprep.subr.bf16.mxu0 %v1008
    %1035 = vmatpush1.bf16.msra.mxu0 %v1007
    %1036 = vmatprep.subr.bf16.mxu0 %v1010
    %1037 = vmatpush1.bf16.msra.mxu0 %v1009
    %1038 = vmatprep.subr.bf16.mxu0 %v1012
    %1039 = vmatpush1.bf16.msra.mxu0 %v1011
    %1040 = vmatprep.subr.bf16.mxu0 %v1014
    %1041 = vmatpush1.bf16.msra.mxu0 %v1013
    %1042 = vmatprep.subr.bf16.mxu0 %v1016
    %1043 = vmatpush1.bf16.msra.mxu0 %v1015
    %1044 = vmatprep.subr.bf16.mxu0 0
    %1045 = vmatpush1.bf16.msra.mxu0 0
    %1046 = vmatprep.subr.bf16.mxu0 0
    %1047 = vmatpush1.bf16.msra.mxu0 0
    %1048 = vmatprep.subr.bf16.mxu0 0
    %1049 = vmatpush1.bf16.msra.mxu0 0
    %1050 = vmatprep.subr.bf16.mxu0 0
    %1051 = vmatpush1.bf16.msra.mxu0 0
    %1052 = vmatprep.subr.bf16.mxu0 0
    %1053 = vmatpush1.bf16.msra.mxu0 0
    %1054 = vmatprep.subr.bf16.mxu0 0
    %1055 = vmatpush1.bf16.msra.mxu0 0
    %1056 = vmatprep.subr.bf16.mxu0 0
    %1057 = vmatpush1.bf16.msra.mxu0 0
    %1058 = vmatprep.subr.bf16.mxu0 0
    %1059 = vmatpush1.bf16.msra.mxu0 0
    %1060 = vmatprep.mubr.bf16.mxu0 0
    %1061 = vmatmul.mubr.bf16.gmra.mrb[0].mxu0 %v371
    %v1062 = vpop.f32.mrb[0].mxu0
    %v1063 = vadd.f32 %v1021, %v1062
    %v1064 = vpop.f32.mrb[0].mxu0
    %v1065 = vadd.f32 %v1025, %v1064
    %v1066 = vpop.f32.mrb[0].mxu0
    %v1067 = vadd.f32 %v1021, %v1066
    %v1068 = vpop.f32.mrb[0].mxu0
    %v1069 = vadd.f32 %v1025, %v1068
    %1070 = vmatprep.mubr.bf16.mxu0 0
    %1071 = vmatmul.mubr.bf16.gmra.mrb[0].mxu0 %v372
    %v1072 = vpop.f32.mrb[0].mxu0
    %v1073 = vadd.f32 %v1021, %v1072
    %v1074 = vpop.f32.mrb[0].mxu0
    %v1075 = vadd.f32 %v1025, %v1074
    %v1076 = vpop.f32.mrb[0].mxu0
    %v1077 = vadd.f32 %v1021, %v1076
    %v1078 = vpop.f32.mrb[0].mxu0
    %v1079 = vadd.f32 %v1025, %v1078
    %1080 = vmatprep.mubr.bf16.mxu0 0
    %1081 = vmatmul.mubr.bf16.gmra.mrb[0].mxu0 %v373
    %v1082 = vpop.f32.mrb[0].mxu0
    %v1083 = vadd.f32 %v1021, %v1082
    %v1084 = vpop.f32.mrb[0].mxu0
    %v1085 = vadd.f32 %v1025, %v1084
    %v1086 = vpop.f32.mrb[0].mxu0
    %v1087 = vadd.f32 %v1021, %v1086
    %v1088 = vpop.f32.mrb[0].mxu0
    %v1089 = vadd.f32 %v1025, %v1088
    %1090 = vmatprep.mubr.bf16.mxu0 0
    %1091 = vmatmul.mubr.bf16.gmra.mrb[0].mxu0 %v374
    %v1092 = vpop.f32.mrb[0].mxu0
    %v1093 = vadd.f32 %v1021, %v1092
    %v1094 = vpop.f32.mrb[0].mxu0
    %v1095 = vadd.f32 %v1025, %v1094
    %v1096 = vpop.f32.mrb[0].mxu0
    %v1097 = vadd.f32 %v1021, %v1096
    %v1098 = vpop.f32.mrb[0].mxu0
    %v1099 = vadd.f32 %v1025, %v1098
    %1100 = vmatprep.mubr.bf16.mxu0 0
    %1101 = vmatmul.mubr.bf16.gmra.mrb[0].mxu0 %v375
    %v1102 = vpop.f32.mrb[0].mxu0
    %v1103 = vadd.f32 %v1021, %v1102
    %v1104 = vpop.f32.mrb[0].mxu0
    %v1105 = vadd.f32 %v1025, %v1104
    %v1106 = vpop.f32.mrb[0].mxu0
    %v1107 = vadd.f32 %v1021, %v1106
    %v1108 = vpop.f32.mrb[0].mxu0
    %v1109 = vadd.f32 %v1025, %v1108
    %1110 = vmatprep.mubr.bf16.mxu0 0
    %1111 = vmatmul.mubr.bf16.gmra.mrb[0].mxu0 %v376
    %v1112 = vpop.f32.mrb[0].mxu0
    %v1113 = vadd.f32 %v1021, %v1112
    %v1114 = vpop.f32.mrb[0].mxu0
    %v1115 = vadd.f32 %v1025, %v1114
    %v1116 = vpop.f32.mrb[0].mxu0
    %v1117 = vadd.f32 %v1021, %v1116
    %v1118 = vpop.f32.mrb[0].mxu0
    %v1119 = vadd.f32 %v1025, %v1118
    %1120 = vmatprep.mubr.bf16.mxu0 0
    %1121 = vmatmul.mubr.bf16.gmra.mrb[0].mxu0 %v377
    %v1122 = vpop.f32.mrb[0].mxu0
    %v1123 = vadd.f32 %v1021, %v1122
    %v1124 = vpop.f32.mrb[0].mxu0
    %v1125 = vadd.f32 %v1025, %v1124
    %v1126 = vpop.f32.mrb[0].mxu0
    %v1127 = vadd.f32 %v1021, %v1126
    %v1128 = vpop.f32.mrb[0].mxu0
    %v1129 = vadd.f32 %v1025, %v1128
    %1130 = vmatprep.mubr.bf16.mxu0 0
    %1131 = vmatmul.mubr.bf16.gmra.mrb[0].mxu0 %v378
    %v1132 = vpop.f32.mrb[0].mxu0
    %v1133 = vadd.f32 %v1021, %v1132
    %v1134 = vpop.f32.mrb[0].mxu0
    %v1135 = vadd.f32 %v1025, %v1134
    %v1136 = vpop.f32.mrb[0].mxu0
    %v1137 = vadd.f32 %v1021, %v1136
    %v1138 = vpop.f32.mrb[0].mxu0
    %v1139 = vadd.f32 %v1025, %v1138
    %1140 = vdwg.mxu0
    %v1141 = vmax.f32 %v1063, 0.0
    %v1142 = vmax.f32 %v1067, 0.0
    %v1143 = vmax.f32 %v1073, 0.0
    %v1144 = vmax.f32 %v1077, 0.0
    %v1145 = vmax.f32 %v1083, 0.0
    %v1146 = vmax.f32 %v1087, 0.0
    %v1147 = vmax.f32 %v1093, 0.0
    %v1148 = vmax.f32 %v1097, 0.0
    %v1149 = vmax.f32 %v1103, 0.0
    %v1150 = vmax.f32 %v1107, 0.0
    %v1151 = vmax.f32 %v1113, 0.0
    %v1152 = vmax.f32 %v1117, 0.0
    %v1153 = vmax.f32 %v1123, 0.0
    %v1154 = vmax.f32 %v1127, 0.0
    %v1155 = vmax.f32 %v1133, 0.0
    %v1156 = vmax.f32 %v1137, 0.0
    %v1157 = vpack.c.bf16 %v1142, %v1141
    %v1158 = vpack.c.bf16 %v1144, %v1143
    %v1159 = vpack.c.bf16 %v1146, %v1145
    %v1160 = vpack.c.bf16 %v1148, %v1147
    %v1161 = vpack.c.bf16 %v1150, %v1149
    %v1162 = vpack.c.bf16 %v1152, %v1151
    %v1163 = vpack.c.bf16 %v1154, %v1153
    %v1164 = vpack.c.bf16 %v1156, %v1155
    %v1165 = vpack.c.bf16 %v1069, %v1065
    %v1166 = vpack.c.bf16 %v1079, %v1075
    %v1167 = vpack.c.bf16 %v1089, %v1085
    %v1168 = vpack.c.bf16 %v1099, %v1095
    %v1169 = vpack.c.bf16 %v1109, %v1105
    %v1170 = vpack.c.bf16 %v1119, %v1115
    %v1171 = vpack.c.bf16 %v1129, %v1125
    %v1172 = vpack.c.bf16 %v1139, %v1135
    %s1173 = scalar_lea.vmem [#allocation7], 128
    %v1174 = vld [vmem:[%s1173] sm:$0xf]
    %v1175 = vld [vmem:[%s1173 + $0x4] sm:$0xf]
    %v1176 = vld [vmem:[%s1173 + $0x8] sm:$0xf]
    %v1177 = vld [vmem:[%s1173 + $0xc] sm:$0xf]
    %v1178 = vld [vmem:[%s1173 + $0x10] sm:$0xf]
    %v1179 = vld [vmem:[%s1173 + $0x14] sm:$0xf]
    %v1180 = vld [vmem:[%s1173 + $0x18] sm:$0xf]
    %v1181 = vld [vmem:[%s1173 + $0x1c] sm:$0xf]
    %v1182 = vld [vmem:[%s1173 + $0x20] sm:$0xf]
    %v1183 = vld [vmem:[%s1173 + $0x24] sm:$0xf]
    %v1184 = vld [vmem:[%s1173 + $0x28] sm:$0xf]
    %v1185 = vld [vmem:[%s1173 + $0x2c] sm:$0xf]
    %v1186 = vld [vmem:[%s1173 + $0x30] sm:$0xf]
    %v1187 = vld [vmem:[%s1173 + $0x34] sm:$0xf]
    %v1188 = vld [vmem:[%s1173 + $0x38] sm:$0xf]
    %v1189 = vld [vmem:[%s1173 + $0x3c] sm:$0xf]
    %s1190 = scalar_lea.vmem %s4, 2
    %v1191 = vld [vmem:[%s1190] sm:$0x1]
    %v1208 = vunpack.c.l.b16 %v1174
    %v1209 = vunpack.c.l.b16 %v1175
    %v1210 = vunpack.c.l.b16 %v1176
    %v1211 = vunpack.c.l.b16 %v1177
    %v1212 = vunpack.c.l.b16 %v1178
    %v1213 = vunpack.c.l.b16 %v1179
    %v1214 = vunpack.c.l.b16 %v1180
    %v1215 = vunpack.c.l.b16 %v1181
    %v1216 = vunpack.c.l.b16 %v1182
    %v1217 = vunpack.c.l.b16 %v1183
    %v1218 = vunpack.c.l.b16 %v1184
    %v1219 = vunpack.c.l.b16 %v1185
    %v1220 = vunpack.c.l.b16 %v1186
    %v1221 = vunpack.c.l.b16 %v1187
    %v1222 = vunpack.c.l.b16 %v1188
    %v1223 = vunpack.c.l.b16 %v1189
    %v1224 = vpack.c.b16 %v1209, %v1208
    %v1225 = vpack.c.b16 %v1211, %v1210
    %v1226 = vpack.c.b16 %v1213, %v1212
    %v1227 = vpack.c.b16 %v1215, %v1214
    %v1228 = vpack.c.b16 %v1217, %v1216
    %v1229 = vpack.c.b16 %v1219, %v1218
    %v1230 = vpack.c.b16 %v1221, %v1220
    %v1231 = vpack.c.b16 %v1223, %v1222
    %1240 = vmatprep.subr.bf16.mxu0 0
    %1241 = vmatpush1.bf16.msra.mxu0 %v1224
    %1242 = vmatprep.subr.bf16.mxu0 0
    %1243 = vmatpush1.bf16.msra.mxu0 %v1225
    %1244 = vmatprep.subr.bf16.mxu0 0
    %1245 = vmatpush1.bf16.msra.mxu0 %v1226
    %1246 = vmatprep.subr.bf16.mxu0 0
    %1247 = vmatpush1.bf16.msra.mxu0 %v1227
    %1248 = vmatprep.subr.bf16.mxu0 0
    %1249 = vmatpush1.bf16.msra.mxu0 %v1228
    %1250 = vmatprep.subr.bf16.mxu0 0
    %1251 = vmatpush1.bf16.msra.mxu0 %v1229
    %1252 = vmatprep.subr.bf16.mxu0 0
    %1253 = vmatpush1.bf16.msra.mxu0 %v1230
    %1254 = vmatprep.subr.bf16.mxu0 0
    %1255 = vmatpush1.bf16.msra.mxu0 %v1231
    %1256 = vmatprep.subr.bf16.mxu0 0
    %1257 = vmatpush1.bf16.msra.mxu0 0
    %1258 = vmatprep.subr.bf16.mxu0 0
    %1259 = vmatpush1.bf16.msra.mxu0 0
    %1260 = vmatprep.subr.bf16.mxu0 0
    %1261 = vmatpush1.bf16.msra.mxu0 0
    %1262 = vmatprep.subr.bf16.mxu0 0
    %1263 = vmatpush1.bf16.msra.mxu0 0
    %1264 = vmatprep.subr.bf16.mxu0 0
    %1265 = vmatpush1.bf16.msra.mxu0 0
    %1266 = vmatprep.subr.bf16.mxu0 0
    %1267 = vmatpush1.bf16.msra.mxu0 0
    %1268 = vmatprep.subr.bf16.mxu0 0
    %1269 = vmatpush1.bf16.msra.mxu0 0
    %1270 = vmatprep.subr.bf16.mxu0 0
    %1271 = vmatpush1.bf16.msra.mxu0 0
    %1272 = vmatprep.mubr.bf16.mxu0 0
    %1273 = vmatmul.mubr.bf16.gmra.mrb[0].mxu0 %v1157
    %v1274 = vpop.f32.mrb[0].mxu0
    %v1275 = vadd.f32 0.0, %v1274
    %v1276 = vpop.f32.mrb[0].mxu0
    %v1277 = vpop.f32.mrb[0].mxu0
    %v1278 = vadd.f32 0.0, %v1277
    %v1279 = vpop.f32.mrb[0].mxu0
    %1280 = vmatprep.mubr.bf16.mxu0 0
    %1281 = vmatmul.mubr.bf16.gmra.mrb[0].mxu0 %v1158
    %v1282 = vpop.f32.mrb[0].mxu0
    %v1283 = vadd.f32 0.0, %v1282
    %v1284 = vpop.f32.mrb[0].mxu0
    %v1285 = vpop.f32.mrb[0].mxu0
    %v1286 = vadd.f32 0.0, %v1285
    %v1287 = vpop.f32.mrb[0].mxu0
    %1288 = vmatprep.mubr.bf16.mxu0 0
    %1289 = vmatmul.mubr.bf16.gmra.mrb[0].mxu0 %v1159
    %v1290 = vpop.f32.mrb[0].mxu0
    %v1291 = vadd.f32 0.0, %v1290
    %v1292 = vpop.f32.mrb[0].mxu0
    %v1293 = vpop.f32.mrb[0].mxu0
    %v1294 = vadd.f32 0.0, %v1293
    %v1295 = vpop.f32.mrb[0].mxu0
    %1296 = vmatprep.mubr.bf16.mxu0 0
    %1297 = vmatmul.mubr.bf16.gmra.mrb[0].mxu0 %v1160
    %v1298 = vpop.f32.mrb[0].mxu0
    %v1299 = vadd.f32 0.0, %v1298
    %v1300 = vpop.f32.mrb[0].mxu0
    %v1301 = vpop.f32.mrb[0].mxu0
    %v1302 = vadd.f32 0.0, %v1301
    %v1303 = vpop.f32.mrb[0].mxu0
    %1304 = vmatprep.mubr.bf16.mxu0 0
    %1305 = vmatmul.mubr.bf16.gmra.mrb[0].mxu0 %v1161
    %v1306 = vpop.f32.mrb[0].mxu0
    %v1307 = vadd.f32 0.0, %v1306
    %v1308 = vpop.f32.mrb[0].mxu0
    %v1309 = vpop.f32.mrb[0].mxu0
    %v1310 = vadd.f32 0.0, %v1309
    %v1311 = vpop.f32.mrb[0].mxu0
    %1312 = vmatprep.mubr.bf16.mxu0 0
    %1313 = vmatmul.mubr.bf16.gmra.mrb[0].mxu0 %v1162
    %v1314 = vpop.f32.mrb[0].mxu0
    %v1315 = vadd.f32 0.0, %v1314
    %v1316 = vpop.f32.mrb[0].mxu0
    %v1317 = vpop.f32.mrb[0].mxu0
    %v1318 = vadd.f32 0.0, %v1317
    %v1319 = vpop.f32.mrb[0].mxu0
    %1320 = vmatprep.mubr.bf16.mxu0 0
    %1321 = vmatmul.mubr.bf16.gmra.mrb[0].mxu0 %v1163
    %v1322 = vpop.f32.mrb[0].mxu0
    %v1323 = vadd.f32 0.0, %v1322
    %v1324 = vpop.f32.mrb[0].mxu0
    %v1325 = vpop.f32.mrb[0].mxu0
    %v1326 = vadd.f32 0.0, %v1325
    %v1327 = vpop.f32.mrb[0].mxu0
    %1328 = vmatprep.mubr.bf16.mxu0 0
    %1329 = vmatmul.mubr.bf16.gmra.mrb[0].mxu0 %v1164
    %v1330 = vpop.f32.mrb[0].mxu0
    %v1331 = vadd.f32 0.0, %v1330
    %v1332 = vpop.f32.mrb[0].mxu0
    %v1333 = vpop.f32.mrb[0].mxu0
    %v1334 = vadd.f32 0.0, %v1333
    %v1335 = vpop.f32.mrb[0].mxu0
    %1336 = vdwg.mxu0
    %v1337 = vpack.c.bf16 %v1278, %v1275
    %v1338 = vpack.c.bf16 %v1286, %v1283
    %v1339 = vpack.c.bf16 %v1294, %v1291
    %v1340 = vpack.c.bf16 %v1302, %v1299
    %v1341 = vpack.c.bf16 %v1310, %v1307
    %v1342 = vpack.c.bf16 %v1318, %v1315
    %v1343 = vpack.c.bf16 %v1326, %v1323
    %v1344 = vpack.c.bf16 %v1334, %v1331
    %v1346 = vlaneseq
    %v1347 = vshrl.u32 %v1346, 7
    %v1348 = vsub.s32 0, %v1347
    %v1349 = vrot.slane %v1191, %v1348
    %1351 = vmatprep.subr.bf16.mxu0 0
    %1352 = vmatpush1.bf16.msra.mxu0 %v1337
    %1353 = vmatprep.subr.bf16.mxu0 0
    %1354 = vmatpush1.bf16.msra.mxu0 %v1338
    %1355 = vmatprep.subr.bf16.mxu0 0
    %1356 = vmatpush1.bf16.msra.mxu0 %v1339
    %1357 = vmatprep.subr.bf16.mxu0 0
    %1358 = vmatpush1.bf16.msra.mxu0 %v1340
    %1359 = vmatprep.subr.bf16.mxu0 0
    %1360 = vmatpush1.bf16.msra.mxu0 %v1341
    %1361 = vmatprep.subr.bf16.mxu0 0
    %1362 = vmatpush1.bf16.msra.mxu0 %v1342
    %1363 = vmatprep.subr.bf16.mxu0 0
    %1364 = vmatpush1.bf16.msra.mxu0 %v1343
    %1365 = vmatprep.subr.bf16.mxu0 0
    %1366 = vmatpush1.bf16.msra.mxu0 %v1344
    %1367 = vmatprep.subr.bf16.mxu0 0
    %1368 = vmatpush1.bf16.msra.mxu0 0
    %1369 = vmatprep.subr.bf16.mxu0 0
    %1370 = vmatpush1.bf16.msra.mxu0 0
    %1371 = vmatprep.subr.bf16.mxu0 0
    %1372 = vmatpush1.bf16.msra.mxu0 0
    %1373 = vmatprep.subr.bf16.mxu0 0
    %1374 = vmatpush1.bf16.msra.mxu0 0
    %1375 = vmatprep.subr.bf16.mxu0 0
    %1376 = vmatpush1.bf16.msra.mxu0 0
    %1377 = vmatprep.subr.bf16.mxu0 0
    %1378 = vmatpush1.bf16.msra.mxu0 0
    %1379 = vmatprep.subr.bf16.mxu0 0
    %1380 = vmatpush1.bf16.msra.mxu0 0
    %1381 = vmatprep.subr.bf16.mxu0 0
    %1382 = vmatpush1.bf16.msra.mxu0 0
    %1383 = vmatprep.mubr.bf16.mxu0 0
    %1384 = vmatmul.mubr.bf16.gmra.mrb[0].mxu0 %v371
    %v1385 = vpop.f32.mrb[0].mxu0
    %v1386 = vadd.f32 %v1349, %v1385
    %v1387 = vpop.f32.mrb[0].mxu0
    %v1388 = vpop.f32.mrb[0].mxu0
    %v1389 = vadd.f32 %v1349, %v1388
    %v1390 = vpop.f32.mrb[0].mxu0
    %1391 = vmatprep.mubr.bf16.mxu0 0
    %1392 = vmatmul.mubr.bf16.gmra.mrb[0].mxu0 %v372
    %v1393 = vpop.f32.mrb[0].mxu0
    %v1394 = vadd.f32 %v1349, %v1393
    %v1395 = vpop.f32.mrb[0].mxu0
    %v1396 = vpop.f32.mrb[0].mxu0
    %v1397 = vadd.f32 %v1349, %v1396
    %v1398 = vpop.f32.mrb[0].mxu0
    %1399 = vmatprep.mubr.bf16.mxu0 0
    %1400 = vmatmul.mubr.bf16.gmra.mrb[0].mxu0 %v373
    %v1401 = vpop.f32.mrb[0].mxu0
    %v1402 = vadd.f32 %v1349, %v1401
    %v1403 = vpop.f32.mrb[0].mxu0
    %v1404 = vpop.f32.mrb[0].mxu0
    %v1405 = vadd.f32 %v1349, %v1404
    %v1406 = vpop.f32.mrb[0].mxu0
    %1407 = vmatprep.mubr.bf16.mxu0 0
    %1408 = vmatmul.mubr.bf16.gmra.mrb[0].mxu0 %v374
    %v1409 = vpop.f32.mrb[0].mxu0
    %v1410 = vadd.f32 %v1349, %v1409
    %v1411 = vpop.f32.mrb[0].mxu0
    %v1412 = vpop.f32.mrb[0].mxu0
    %v1413 = vadd.f32 %v1349, %v1412
    %v1414 = vpop.f32.mrb[0].mxu0
    %1415 = vmatprep.mubr.bf16.mxu0 0
    %1416 = vmatmul.mubr.bf16.gmra.mrb[0].mxu0 %v375
    %v1417 = vpop.f32.mrb[0].mxu0
    %v1418 = vadd.f32 %v1349, %v1417
    %v1419 = vpop.f32.mrb[0].mxu0
    %v1420 = vpop.f32.mrb[0].mxu0
    %v1421 = vadd.f32 %v1349, %v1420
    %v1422 = vpop.f32.mrb[0].mxu0
    %1423 = vmatprep.mubr.bf16.mxu0 0
    %1424 = vmatmul.mubr.bf16.gmra.mrb[0].mxu0 %v376
    %v1425 = vpop.f32.mrb[0].mxu0
    %v1426 = vadd.f32 %v1349, %v1425
    %v1427 = vpop.f32.mrb[0].mxu0
    %v1428 = vpop.f32.mrb[0].mxu0
    %v1429 = vadd.f32 %v1349, %v1428
    %v1430 = vpop.f32.mrb[0].mxu0
    %1431 = vmatprep.mubr.bf16.mxu0 0
    %1432 = vmatmul.mubr.bf16.gmra.mrb[0].mxu0 %v377
    %v1433 = vpop.f32.mrb[0].mxu0
    %v1434 = vadd.f32 %v1349, %v1433
    %v1435 = vpop.f32.mrb[0].mxu0
    %v1436 = vpop.f32.mrb[0].mxu0
    %v1437 = vadd.f32 %v1349, %v1436
    %v1438 = vpop.f32.mrb[0].mxu0
    %1439 = vmatprep.mubr.bf16.mxu0 0
    %1440 = vmatmul.mubr.bf16.gmra.mrb[0].mxu0 %v378
    %v1441 = vpop.f32.mrb[0].mxu0
    %v1442 = vadd.f32 %v1349, %v1441
    %v1443 = vpop.f32.mrb[0].mxu0
    %v1444 = vpop.f32.mrb[0].mxu0
    %v1445 = vadd.f32 %v1349, %v1444
    %v1446 = vpop.f32.mrb[0].mxu0
    %1447 = vdwg.mxu0
    %1448 = vst [vmem:[#allocation10] sm:$0xff] %v1386
    %1449 = vst [vmem:[#allocation10 + $0x8] sm:$0xff] %v1389
    %1450 = vst [vmem:[#allocation10 + $0x10] sm:$0xff] %v1394
    %1451 = vst [vmem:[#allocation10 + $0x18] sm:$0xff] %v1397
    %1452 = vst [vmem:[#allocation10 + $0x20] sm:$0xff] %v1402
    %1453 = vst [vmem:[#allocation10 + $0x28] sm:$0xff] %v1405
    %1454 = vst [vmem:[#allocation10 + $0x30] sm:$0xff] %v1410
    %1455 = vst [vmem:[#allocation10 + $0x38] sm:$0xff] %v1413
    %1456 = vst [vmem:[#allocation10 + $0x40] sm:$0xff] %v1418
    %1457 = vst [vmem:[#allocation10 + $0x48] sm:$0xff] %v1421
    %1458 = vst [vmem:[#allocation10 + $0x50] sm:$0xff] %v1426
    %1459 = vst [vmem:[#allocation10 + $0x58] sm:$0xff] %v1429
    %1460 = vst [vmem:[#allocation10 + $0x60] sm:$0xff] %v1434
    %1461 = vst [vmem:[#allocation10 + $0x68] sm:$0xff] %v1437
    %1462 = vst [vmem:[#allocation10 + $0x70] sm:$0xff] %v1442
    %1463 = vst [vmem:[#allocation10 + $0x78] sm:$0xff] %v1445
    %1464 = vmatprep.subr.bf16.mxu0 0
    %1465 = vmatpush1.bf16.xpose.msra.mxu0 %v1165
    %1466 = vmatprep.subr.bf16.mxu0 0
    %1467 = vmatpush1.bf16.xpose.msra.mxu0 %v1166
    %1468 = vmatprep.subr.bf16.mxu0 0
    %1469 = vmatpush1.bf16.xpose.msra.mxu0 %v1167
    %1470 = vmatprep.subr.bf16.mxu0 0
    %1471 = vmatpush1.bf16.xpose.msra.mxu0 %v1168
    %1472 = vmatprep.subr.bf16.mxu0 0
    %1473 = vmatpush1.bf16.xpose.msra.mxu0 %v1169
    %1474 = vmatprep.subr.bf16.mxu0 0
    %1475 = vmatpush1.bf16.xpose.msra.mxu0 %v1170
    %1476 = vmatprep.subr.bf16.mxu0 0
    %1477 = vmatpush1.bf16.xpose.msra.mxu0 %v1171
    %1478 = vmatprep.subr.bf16.mxu0 0
    %1479 = vmatpush1.bf16.xpose.msra.mxu0 %v1172
    %1480 = vmatprep.subr.bf16.mxu0 0
    %1481 = vmatpush1.bf16.xpose.msra.mxu0 0
    %1482 = vmatprep.subr.bf16.mxu0 0
    %1483 = vmatpush1.bf16.xpose.msra.mxu0 0
    %1484 = vmatprep.subr.bf16.mxu0 0
    %1485 = vmatpush1.bf16.xpose.msra.mxu0 0
    %1486 = vmatprep.subr.bf16.mxu0 0
    %1487 = vmatpush1.bf16.xpose.msra.mxu0 0
    %1488 = vmatprep.subr.bf16.mxu0 0
    %1489 = vmatpush1.bf16.xpose.msra.mxu0 0
    %1490 = vmatprep.subr.bf16.mxu0 0
    %1491 = vmatpush1.bf16.xpose.msra.mxu0 0
    %1492 = vmatprep.subr.bf16.mxu0 0
    %1493 = vmatpush1.bf16.xpose.msra.mxu0 0
    %1494 = vmatprep.subr.bf16.mxu0 0
    %1495 = vmatpush1.bf16.xpose.msra.mxu0 0
    %1496 = vmatprep.mubr.bf16.mxu0 0
    %1497 = vmatmul.mubr.bf16.gmra.mrb[0].mxu0 %v1165
    %v1498 = vpop.f32.mrb[0].mxu0
    %v1499 = vadd.f32 0.0, %v1498
    %v1500 = vpop.f32.mrb[0].mxu0
    %v1501 = vpop.f32.mrb[0].mxu0
    %v1502 = vadd.f32 0.0, %v1501
    %v1503 = vpop.f32.mrb[0].mxu0
    %1504 = vmatprep.mubr.bf16.mxu0 0
    %1505 = vmatmul.mubr.bf16.gmra.mrb[0].mxu0 %v1166
    %v1506 = vpop.f32.mrb[0].mxu0
    %v1507 = vadd.f32 0.0, %v1506
    %v1508 = vpop.f32.mrb[0].mxu0
    %v1509 = vpop.f32.mrb[0].mxu0
    %v1510 = vadd.f32 0.0, %v1509
    %v1511 = vpop.f32.mrb[0].mxu0
    %1512 = vmatprep.mubr.bf16.mxu0 0
    %1513 = vmatmul.mubr.bf16.gmra.mrb[0].mxu0 %v1167
    %v1514 = vpop.f32.mrb[0].mxu0
    %v1515 = vadd.f32 0.0, %v1514
    %v1516 = vpop.f32.mrb[0].mxu0
    %v1517 = vpop.f32.mrb[0].mxu0
    %v1518 = vadd.f32 0.0, %v1517
    %v1519 = vpop.f32.mrb[0].mxu0
    %1520 = vmatprep.mubr.bf16.mxu0 0
    %1521 = vmatmul.mubr.bf16.gmra.mrb[0].mxu0 %v1168
    %v1522 = vpop.f32.mrb[0].mxu0
    %v1523 = vadd.f32 0.0, %v1522
    %v1524 = vpop.f32.mrb[0].mxu0
    %v1525 = vpop.f32.mrb[0].mxu0
    %v1526 = vadd.f32 0.0, %v1525
    %v1527 = vpop.f32.mrb[0].mxu0
    %1528 = vmatprep.mubr.bf16.mxu0 0
    %1529 = vmatmul.mubr.bf16.gmra.mrb[0].mxu0 %v1169
    %v1530 = vpop.f32.mrb[0].mxu0
    %v1531 = vadd.f32 0.0, %v1530
    %v1532 = vpop.f32.mrb[0].mxu0
    %v1533 = vpop.f32.mrb[0].mxu0
    %v1534 = vadd.f32 0.0, %v1533
    %v1535 = vpop.f32.mrb[0].mxu0
    %1536 = vmatprep.mubr.bf16.mxu0 0
    %1537 = vmatmul.mubr.bf16.gmra.mrb[0].mxu0 %v1170
    %v1538 = vpop.f32.mrb[0].mxu0
    %v1539 = vadd.f32 0.0, %v1538
    %v1540 = vpop.f32.mrb[0].mxu0
    %v1541 = vpop.f32.mrb[0].mxu0
    %v1542 = vadd.f32 0.0, %v1541
    %v1543 = vpop.f32.mrb[0].mxu0
    %1544 = vmatprep.mubr.bf16.mxu0 0
    %1545 = vmatmul.mubr.bf16.gmra.mrb[0].mxu0 %v1171
    %v1546 = vpop.f32.mrb[0].mxu0
    %v1547 = vadd.f32 0.0, %v1546
    %v1548 = vpop.f32.mrb[0].mxu0
    %v1549 = vpop.f32.mrb[0].mxu0
    %v1550 = vadd.f32 0.0, %v1549
    %v1551 = vpop.f32.mrb[0].mxu0
    %1552 = vmatprep.mubr.bf16.mxu0 0
    %1553 = vmatmul.mubr.bf16.gmra.mrb[0].mxu0 %v1172
    %v1554 = vpop.f32.mrb[0].mxu0
    %v1555 = vadd.f32 0.0, %v1554
    %v1556 = vpop.f32.mrb[0].mxu0
    %v1557 = vpop.f32.mrb[0].mxu0
    %v1558 = vadd.f32 0.0, %v1557
    %v1559 = vpop.f32.mrb[0].mxu0
    %1560 = vdwg.mxu0
    %1561 = vst [vmem:[#allocation11] sm:$0xff] %v1499
    %1562 = vst [vmem:[#allocation11 + $0x8] sm:$0xff] %v1502
    %1563 = vst [vmem:[#allocation11 + $0x10] sm:$0xff] %v1507
    %1564 = vst [vmem:[#allocation11 + $0x18] sm:$0xff] %v1510
    %1565 = vst [vmem:[#allocation11 + $0x20] sm:$0xff] %v1515
    %1566 = vst [vmem:[#allocation11 + $0x28] sm:$0xff] %v1518
    %1567 = vst [vmem:[#allocation11 + $0x30] sm:$0xff] %v1523
    %1568 = vst [vmem:[#allocation11 + $0x38] sm:$0xff] %v1526
    %1569 = vst [vmem:[#allocation11 + $0x40] sm:$0xff] %v1531
    %1570 = vst [vmem:[#allocation11 + $0x48] sm:$0xff] %v1534
    %1571 = vst [vmem:[#allocation11 + $0x50] sm:$0xff] %v1539
    %1572 = vst [vmem:[#allocation11 + $0x58] sm:$0xff] %v1542
    %1573 = vst [vmem:[#allocation11 + $0x60] sm:$0xff] %v1547
    %1574 = vst [vmem:[#allocation11 + $0x68] sm:$0xff] %v1550
    %1575 = vst [vmem:[#allocation11 + $0x70] sm:$0xff] %v1555
    %1576 = vst [vmem:[#allocation11 + $0x78] sm:$0xff] %v1558
    // Predicated region
    $region42: #{tpu_custom_call.1} parent=1 // pred_check
      _
    $region43: #{tpu_custom_call.1} parent=1 // pred_check_branch
      %1578 = sbr.rel (0) target = $region45
    $region44: #{tpu_custom_call.1} parent=1 // pred_region
      %s1580 = ssub.s32 2048, 2048
      %1581 = vsyncadd [#allocation4], %s1580
      %s1582 = sshll.u32 [#allocation10], 4
      %s1583 = int_to_ptr.vmem [resolvable:$true] %s1582
      %1588 = dma.vmem_to_hbm [thread:$0]  %s1583, 2048, %s6, [#allocation4], 128, 128, 8
    $region45: #{tpu_custom_call.1} parent=1 // pred_fallthru
      _
    // Predicated region
    $region46: #{tpu_custom_call.1} parent=1 // pred_check
      _
    $region47: #{tpu_custom_call.1} parent=1 // pred_check_branch
      %1590 = sbr.rel (0) target = $region49
    $region48: #{tpu_custom_call.1} parent=1 // pred_region
      %s1592 = ssub.s32 2048, 2048
      %1593 = vsyncadd [#allocation12], %s1592
      %s1594 = sshll.u32 [#allocation11], 4
      %s1595 = int_to_ptr.vmem [resolvable:$true] %s1594
      %1600 = dma.vmem_to_hbm [thread:$0]  %s1595, 2048, %s7, [#allocation12], 128, 128, 8
    $region49: #{tpu_custom_call.1} parent=1 // pred_fallthru
      _
    // Predicated region
    $region50: #{tpu_custom_call.1} parent=1 // pred_check
      _
    $region51: #{tpu_custom_call.1} parent=1 // pred_check_branch
      %1602 = sbr.rel (0) target = $region53
    $region52: #{tpu_custom_call.1} parent=1 // pred_region
      %1603 = dma.done [#allocation4], 2048
    $region53: #{tpu_custom_call.1} parent=1 // pred_fallthru
      _
    // Predicated region
    $region54: #{tpu_custom_call.1} parent=1 // pred_check
      _
    $region55: #{tpu_custom_call.1} parent=1 // pred_check_branch
      %1605 = sbr.rel (0) target = $region57
    $region56: #{tpu_custom_call.1} parent=1 // pred_region
      %1606 = dma.done [#allocation12], 2048
    $region57: #{tpu_custom_call.1} parent=1 // pred_fallthru
      _
    %1607 = vsyncpa [#allocation3], 1
    %1608 = vsyncpa [#allocation6], 1
    %1609 = vsyncpa [#allocation9], 1
    %1610 = vsyncpa [#allocation4], 1
    %1611 = vsyncpa [#allocation12], 1

</llo_original>
